<compile_context>
chip_gen: v7x
topology: tpu7x:2x2x1
jax: 0.10.0
libtpu: 0.0.40
codegen_flags: <defaults>
</compile_context>

<pallas_src>
import numpy as np
import jax
import jax.numpy as jnp
from jax import lax
from jax.experimental import pallas as pl
from jax.experimental.pallas import tpu as pltpu

BN_EPS = 1e-5                      # torch.nn.BatchNorm1d default eps
SQRT_HALF = float(np.sqrt(0.5))    # GLU_Block residual scale


def _round_up(x, m):
    return ((x + m - 1) // m) * m


def make_tabnet_decoder(input_dim, n_d=8, n_steps=3, n_independent=1,
                        n_shared=1, virtual_batch_size=128, vb_per_tile=2):
    """Returns (forward, pack_params) implementing TabNetDecoder.forward."""
    S, D = n_steps, n_d
    L = n_shared + n_independent            # GLU layers per feature transformer
    L_pad = max(L, 1)                       # keep packed arrays non-empty
    fused_in = S * D                        # step outputs fused on feature axis
    fused_hid = 2 * S * D                   # fused FC output width
    out_pad = max(128, _round_up(input_dim, 128))   # lane-dense output slab
    batch_tile = vb_per_tile * virtual_batch_size

    def kernel(x_ref, w_ref, g_ref, b_ref, wrec_ref, out_ref):
        x = x_ref[...]                                     # (tile, S*D)
        for l in range(L):                                 # small static unroll
            # One block-diagonal MXU matmul covers this GLU layer for ALL steps.
            h = jnp.dot(x, w_ref[l], preferred_element_type=jnp.float32)
            # Ghost BatchNorm: per-virtual-batch statistics (training mode).
            chunks = []
            for c in range(vb_per_tile):                   # tile-aligned slices
                hc = h[c * virtual_batch_size:(c + 1) * virtual_batch_size, :]
                mu = jnp.mean(hc, axis=0, keepdims=True)
                var = jnp.mean(jnp.square(hc - mu), axis=0, keepdims=True)
                chunks.append((hc - mu) * lax.rsqrt(var + BN_EPS))
            hn = chunks[0] if vb_per_tile == 1 else jnp.concatenate(chunks, axis=0)
            hb = hn * g_ref[l] + b_ref[l]                  # BN affine params
            # GLU: columns were permuted host-side to [values | gates].
            glu = hb[:, :fused_in] * jax.nn.sigmoid(hb[:, fused_in:])
            x = glu if l == 0 else (x + glu) * SQRT_HALF
        # Sum over steps folded into the tiled, zero-padded reconstruction
        # weight -> single lane-dense (tile, out_pad) store.
        out_ref[...] = jnp.dot(x, wrec_ref[...],
                               preferred_element_type=jnp.float32)

    def pack_params(shared_w, spec_w, bn_gamma, bn_beta, rec_w):
        """Pack torch-layout weights into fused block-diagonal operands.

        shared_w : list[n_shared] of (2*n_d, n_d)    (shared across all steps)
        spec_w   : list[n_steps][n_independent] of (2*n_d, n_d)
        bn_gamma : list[n_steps][L] of (2*n_d,)
        bn_beta  : list[n_steps][L] of (2*n_d,)
        rec_w    : (input_dim, n_d)
        """
        W_all = np.zeros((L_pad, fused_in, fused_hid), np.float32)
        g_all = np.zeros((L_pad, 1, fused_hid), np.float32)
        b_all = np.zeros((L_pad, 1, fused_hid), np.float32)
        for l in range(L):
            for s in range(S):
                W = shared_w[l] if l < n_shared else spec_w[s][l - n_shared]
                Wt = np.asarray(W, np.float32).T           # (D, 2D)
                W_all[l, s*D:(s+1)*D, s*D:(s+1)*D] = Wt[:, :D]          # value
                W_all[l, s*D:(s+1)*D,
                      fused_in + s*D:fused_in + (s+1)*D] = Wt[:, D:]    # gate
                ga = np.asarray(bn_gamma[s][l], np.float32)
                be = np.asarray(bn_beta[s][l], np.float32)
                g_all[l, 0, s*D:(s+1)*D] = ga[:D]
                g_all[l, 0, fused_in + s*D:fused_in + (s+1)*D] = ga[D:]
                b_all[l, 0, s*D:(s+1)*D] = be[:D]
                b_all[l, 0, fused_in + s*D:fused_in + (s+1)*D] = be[D:]
        wrec_pad = np.zeros((D, out_pad), np.float32)
        wrec_pad[:, :input_dim] = np.asarray(rec_w, np.float32).T
        wrec_tiled = np.tile(wrec_pad, (S, 1))             # (S*D, out_pad)
        return (jnp.asarray(W_all), jnp.asarray(g_all), jnp.asarray(b_all),
                jnp.asarray(wrec_tiled))

    @jax.jit
    def forward(steps_output, W_all, g_all, b_all, wrec_tiled):
        # Layout plumbing only: one lane-contiguous fused input slab.
        x_fused = jnp.concatenate(steps_output, axis=1)    # (B, S*D)
        B = x_fused.shape[0]
        assert B % batch_tile == 0, (
            "batch must be a multiple of vb_per_tile * virtual_batch_size")
        grid = (B // batch_tile,)
        out = pl.pallas_call(
            kernel,
            out_shape=jax.ShapeDtypeStruct((B, out_pad), jnp.float32),
            grid_spec=pltpu.PrefetchScalarGridSpec(
                num_scalar_prefetch=0,
                grid=grid,
                in_specs=[
                    pl.BlockSpec((batch_tile, fused_in), lambda i: (i, 0)),
                    pl.BlockSpec((L_pad, fused_in, fused_hid),
                                 lambda i: (0, 0, 0)),
                    pl.BlockSpec((L_pad, 1, fused_hid), lambda i: (0, 0, 0)),
                    pl.BlockSpec((L_pad, 1, fused_hid), lambda i: (0, 0, 0)),
                    pl.BlockSpec((fused_in, out_pad), lambda i: (0, 0)),
                ],
                out_specs=pl.BlockSpec((batch_tile, out_pad),
                                       lambda i: (i, 0)),
            ),
            compiler_params=pltpu.CompilerParams(
                dimension_semantics=("parallel",)),
        )(x_fused, W_all, g_all, b_all, wrec_tiled)
        return out[:, :input_dim]                          # drop lane padding

    return forward, pack_params


# --------------------------- pure-JAX reference -----------------------------

def _gbn_train_ref(h, gamma, beta, vbs, eps=BN_EPS):
    B, C = h.shape
    hc = h.reshape(B // vbs, vbs, C)
    mu = jnp.mean(hc, axis=1, keepdims=True)
    var = jnp.mean(jnp.square(hc - mu), axis=1, keepdims=True)
    hn = ((hc - mu) * lax.rsqrt(var + eps)).reshape(B, C)
    return hn * gamma[None, :] + beta[None, :]


def reference_forward(steps_output, shared_w, spec_w, bn_gamma, bn_beta, rec_w,
                      n_shared, n_independent, virtual_batch_size):
    """Replicates TabNetDecoder.forward (training-mode ghost BN) in plain JAX."""
    L = n_shared + n_independent
    res = 0.0
    for s, x in enumerate(steps_output):
        D = x.shape[1]
        for l in range(L):
            W = shared_w[l] if l < n_shared else spec_w[s][l - n_shared]
            h = jnp.dot(x, W.T, precision=lax.Precision.HIGHEST)
            h = _gbn_train_ref(h, bn_gamma[s][l], bn_beta[s][l],
                               virtual_batch_size)
            glu = h[:, :D] * jax.nn.sigmoid(h[:, D:])
            x = glu if l == 0 else (x + glu) * SQRT_HALF
        res = res + x
    return jnp.dot(res, rec_w.T, precision=lax.Precision.HIGHEST)


if __name__ == "__main__":
    # Small deterministic configuration (TabNetDecoder defaults).
    input_dim = 16
    n_d = 8
    n_steps = 3
    n_independent = 1
    n_shared = 1
    virtual_batch_size = 128
    vb_per_tile = 2            # batch_tile = 256 rows, grid = 4 steps
    batch = 1024

    S, D = n_steps, n_d
    L = n_shared + n_independent

    key = jax.random.PRNGKey(0)
    kit = iter(jax.random.split(key, 32))

    shared_w = [0.3 * jax.random.normal(next(kit), (2 * D, D), jnp.float32)
                for _ in range(n_shared)]
    spec_w = [[0.3 * jax.random.normal(next(kit), (2 * D, D), jnp.float32)
               for _ in range(n_independent)] for _ in range(S)]
    bn_gamma = [[1.0 + 0.1 * jax.random.normal(next(kit), (2 * D,), jnp.float32)
                 for _ in range(L)] for _ in range(S)]
    bn_beta = [[0.1 * jax.random.normal(next(kit), (2 * D,), jnp.float32)
                for _ in range(L)] for _ in range(S)]
    rec_w = 0.3 * jax.random.normal(next(kit), (input_dim, D), jnp.float32)
    steps_output = [jax.random.normal(next(kit), (batch, D), jnp.float32)
                    for _ in range(S)]

    forward, pack_params = make_tabnet_decoder(
        input_dim, n_d=n_d, n_steps=n_steps, n_independent=n_independent,
        n_shared=n_shared, virtual_batch_size=virtual_batch_size,
        vb_per_tile=vb_per_tile)

    packed = pack_params(shared_w, spec_w, bn_gamma, bn_beta, rec_w)
    out = forward(steps_output, *packed)
    out = jax.block_until_ready(out)

    ref = reference_forward(steps_output, shared_w, spec_w, bn_gamma, bn_beta,
                            rec_w, n_shared, n_independent, virtual_batch_size)
    np.testing.assert_allclose(np.asarray(out), np.asarray(ref),
                               rtol=1e-4, atol=2e-5)
    assert out.shape == (batch, input_dim)

    print("KERNEL_OK")
</pallas_src>

<mosaic_0001>
module attributes {stable_mosaic.version = 11 : i64} {
  func.func @kernel(%arg0: i32, %arg1: memref<256x24xf32, #tpu.memory_space<vmem>>, %arg2: memref<2x24x48xf32, #tpu.memory_space<vmem>>, %arg3: memref<2x1x48xf32, #tpu.memory_space<vmem>>, %arg4: memref<2x1x48xf32, #tpu.memory_space<vmem>>, %arg5: memref<24x128xf32, #tpu.memory_space<vmem>>, %arg6: memref<256x128xf32, #tpu.memory_space<vmem>>) attributes {dimension_semantics = [#tpu.dimension_semantics<parallel>], iteration_bounds = array<i64: 4>, scalar_prefetch = 0 : i64, scratch_operands = 0 : i64, tpu.core_type = #tpu.core_type<tc>, window_params = [{transform_indices = @transform_0, window_bounds = array<i64: 256, 24>}, {pipeline_mode = #tpu.pipeline_mode<synchronous>, transform_indices = @transform_1, window_bounds = array<i64: 2, 24, 48>}, {pipeline_mode = #tpu.pipeline_mode<synchronous>, transform_indices = @transform_2, window_bounds = array<i64: 2, 1, 48>}, {pipeline_mode = #tpu.pipeline_mode<synchronous>, transform_indices = @transform_3, window_bounds = array<i64: 2, 1, 48>}, {pipeline_mode = #tpu.pipeline_mode<synchronous>, transform_indices = @transform_4, window_bounds = array<i64: 24, 128>}, {transform_indices = @transform_5, window_bounds = array<i64: 256, 128>}]} {
    %c0 = arith.constant 0 : index
    %c0_0 = arith.constant 0 : index
    %0 = vector.load %arg1[%c0, %c0_0] : memref<256x24xf32, #tpu.memory_space<vmem>>, vector<256x24xf32>
    %c0_1 = arith.constant 0 : index
    %c0_2 = arith.constant 0 : index
    %c0_3 = arith.constant 0 : index
    %1 = vector.load %arg2[%c0_1, %c0_2, %c0_3] : memref<2x24x48xf32, #tpu.memory_space<vmem>>, vector<1x24x48xf32>
    %2 = vector.shape_cast %1 : vector<1x24x48xf32> to vector<24x48xf32>
    %cst = arith.constant dense<0.000000e+00> : vector<256x48xf32>
    %3 = tpu.matmul %0, %2, %cst {dimension_numbers = #tpu.dot_dimension_numbers<[1], [0], [0], [1], [0, 0, 1, 1], [], []>} : vector<256x24xf32>, vector<24x48xf32>, vector<256x48xf32> -> vector<256x48xf32>
    %4 = vector.extract_strided_slice %3 {offsets = [0, 0], sizes = [128, 48], strides = [1, 1]} : vector<256x48xf32> to vector<128x48xf32>
    %cst_4 = arith.constant dense<0.000000e+00> : vector<48xf32>
    %5 = vector.multi_reduction <add>, %4, %cst_4 [0] : vector<128x48xf32> to vector<48xf32>
    %6 = vector.shape_cast %5 : vector<48xf32> to vector<1x48xf32>
    %cst_5 = arith.constant 1.280000e+02 : f32
    %7 = vector.broadcast %cst_5 : f32 to vector<1x48xf32>
    %8 = arith.divf %6, %7 : vector<1x48xf32>
    %9 = vector.broadcast %8 : vector<1x48xf32> to vector<128x48xf32>
    %10 = arith.subf %4, %9 : vector<128x48xf32>
    %11 = arith.mulf %10, %10 : vector<128x48xf32>
    %cst_6 = arith.constant dense<0.000000e+00> : vector<48xf32>
    %12 = vector.multi_reduction <add>, %11, %cst_6 [0] : vector<128x48xf32> to vector<48xf32>
    %13 = vector.shape_cast %12 : vector<48xf32> to vector<1x48xf32>
    %cst_7 = arith.constant 1.280000e+02 : f32
    %14 = vector.broadcast %cst_7 : f32 to vector<1x48xf32>
    %15 = arith.divf %13, %14 : vector<1x48xf32>
    %16 = vector.broadcast %8 : vector<1x48xf32> to vector<128x48xf32>
    %17 = arith.subf %4, %16 : vector<128x48xf32>
    %cst_8 = arith.constant 9.99999974E-6 : f32
    %18 = vector.broadcast %cst_8 : f32 to vector<1x48xf32>
    %19 = arith.addf %15, %18 : vector<1x48xf32>
    %20 = math.rsqrt %19 : vector<1x48xf32>
    %21 = vector.broadcast %20 : vector<1x48xf32> to vector<128x48xf32>
    %22 = arith.mulf %17, %21 : vector<128x48xf32>
    %23 = vector.extract_strided_slice %3 {offsets = [128, 0], sizes = [128, 48], strides = [1, 1]} : vector<256x48xf32> to vector<128x48xf32>
    %cst_9 = arith.constant dense<0.000000e+00> : vector<48xf32>
    %24 = vector.multi_reduction <add>, %23, %cst_9 [0] : vector<128x48xf32> to vector<48xf32>
    %25 = vector.shape_cast %24 : vector<48xf32> to vector<1x48xf32>
    %cst_10 = arith.constant 1.280000e+02 : f32
    %26 = vector.broadcast %cst_10 : f32 to vector<1x48xf32>
    %27 = arith.divf %25, %26 : vector<1x48xf32>
    %28 = vector.broadcast %27 : vector<1x48xf32> to vector<128x48xf32>
    %29 = arith.subf %23, %28 : vector<128x48xf32>
    %30 = arith.mulf %29, %29 : vector<128x48xf32>
    %cst_11 = arith.constant dense<0.000000e+00> : vector<48xf32>
    %31 = vector.multi_reduction <add>, %30, %cst_11 [0] : vector<128x48xf32> to vector<48xf32>
    %32 = vector.shape_cast %31 : vector<48xf32> to vector<1x48xf32>
    %cst_12 = arith.constant 1.280000e+02 : f32
    %33 = vector.broadcast %cst_12 : f32 to vector<1x48xf32>
    %34 = arith.divf %32, %33 : vector<1x48xf32>
    %35 = vector.broadcast %27 : vector<1x48xf32> to vector<128x48xf32>
    %36 = arith.subf %23, %35 : vector<128x48xf32>
    %cst_13 = arith.constant 9.99999974E-6 : f32
    %37 = vector.broadcast %cst_13 : f32 to vector<1x48xf32>
    %38 = arith.addf %34, %37 : vector<1x48xf32>
    %39 = math.rsqrt %38 : vector<1x48xf32>
    %40 = vector.broadcast %39 : vector<1x48xf32> to vector<128x48xf32>
    %41 = arith.mulf %36, %40 : vector<128x48xf32>
    %42 = tpu.concatenate %22, %41 in 0 : vector<128x48xf32>, vector<128x48xf32> -> vector<256x48xf32>
    %c0_14 = arith.constant 0 : index
    %c0_15 = arith.constant 0 : index
    %c0_16 = arith.constant 0 : index
    %43 = vector.load %arg3[%c0_14, %c0_15, %c0_16] : memref<2x1x48xf32, #tpu.memory_space<vmem>>, vector<1x1x48xf32>
    %44 = vector.shape_cast %43 : vector<1x1x48xf32> to vector<1x48xf32>
    %45 = vector.broadcast %44 : vector<1x48xf32> to vector<256x48xf32>
    %46 = arith.mulf %42, %45 : vector<256x48xf32>
    %c0_17 = arith.constant 0 : index
    %c0_18 = arith.constant 0 : index
    %c0_19 = arith.constant 0 : index
    %47 = vector.load %arg4[%c0_17, %c0_18, %c0_19] : memref<2x1x48xf32, #tpu.memory_space<vmem>>, vector<1x1x48xf32>
    %48 = vector.shape_cast %47 : vector<1x1x48xf32> to vector<1x48xf32>
    %49 = vector.broadcast %48 : vector<1x48xf32> to vector<256x48xf32>
    %50 = arith.addf %46, %49 : vector<256x48xf32>
    %51 = vector.extract_strided_slice %50 {offsets = [0, 0], sizes = [256, 24], strides = [1, 1]} : vector<256x48xf32> to vector<256x24xf32>
    %52 = vector.extract_strided_slice %50 {offsets = [0, 24], sizes = [256, 24], strides = [1, 1]} : vector<256x48xf32> to vector<256x24xf32>
    %53 = arith.negf %52 : vector<256x24xf32>
    %54 = math.exp %53 : vector<256x24xf32>
    %cst_20 = arith.constant 1.000000e+00 : f32
    %55 = vector.broadcast %cst_20 : f32 to vector<256x24xf32>
    %56 = arith.addf %55, %54 : vector<256x24xf32>
    %57 = arith.divf %55, %56 : vector<256x24xf32>
    %58 = arith.mulf %51, %57 : vector<256x24xf32>
    %c1 = arith.constant 1 : index
    %c0_21 = arith.constant 0 : index
    %c0_22 = arith.constant 0 : index
    %59 = vector.load %arg2[%c1, %c0_21, %c0_22] : memref<2x24x48xf32, #tpu.memory_space<vmem>>, vector<1x24x48xf32>
    %60 = vector.shape_cast %59 : vector<1x24x48xf32> to vector<24x48xf32>
    %cst_23 = arith.constant dense<0.000000e+00> : vector<256x48xf32>
    %61 = tpu.matmul %58, %60, %cst_23 {dimension_numbers = #tpu.dot_dimension_numbers<[1], [0], [0], [1], [0, 0, 1, 1], [], []>} : vector<256x24xf32>, vector<24x48xf32>, vector<256x48xf32> -> vector<256x48xf32>
    %62 = vector.extract_strided_slice %61 {offsets = [0, 0], sizes = [128, 48], strides = [1, 1]} : vector<256x48xf32> to vector<128x48xf32>
    %cst_24 = arith.constant dense<0.000000e+00> : vector<48xf32>
    %63 = vector.multi_reduction <add>, %62, %cst_24 [0] : vector<128x48xf32> to vector<48xf32>
    %64 = vector.shape_cast %63 : vector<48xf32> to vector<1x48xf32>
    %cst_25 = arith.constant 1.280000e+02 : f32
    %65 = vector.broadcast %cst_25 : f32 to vector<1x48xf32>
    %66 = arith.divf %64, %65 : vector<1x48xf32>
    %67 = vector.broadcast %66 : vector<1x48xf32> to vector<128x48xf32>
    %68 = arith.subf %62, %67 : vector<128x48xf32>
    %69 = arith.mulf %68, %68 : vector<128x48xf32>
    %cst_26 = arith.constant dense<0.000000e+00> : vector<48xf32>
    %70 = vector.multi_reduction <add>, %69, %cst_26 [0] : vector<128x48xf32> to vector<48xf32>
    %71 = vector.shape_cast %70 : vector<48xf32> to vector<1x48xf32>
    %cst_27 = arith.constant 1.280000e+02 : f32
    %72 = vector.broadcast %cst_27 : f32 to vector<1x48xf32>
    %73 = arith.divf %71, %72 : vector<1x48xf32>
    %74 = vector.broadcast %66 : vector<1x48xf32> to vector<128x48xf32>
    %75 = arith.subf %62, %74 : vector<128x48xf32>
    %cst_28 = arith.constant 9.99999974E-6 : f32
    %76 = vector.broadcast %cst_28 : f32 to vector<1x48xf32>
    %77 = arith.addf %73, %76 : vector<1x48xf32>
    %78 = math.rsqrt %77 : vector<1x48xf32>
    %79 = vector.broadcast %78 : vector<1x48xf32> to vector<128x48xf32>
    %80 = arith.mulf %75, %79 : vector<128x48xf32>
    %81 = vector.extract_strided_slice %61 {offsets = [128, 0], sizes = [128, 48], strides = [1, 1]} : vector<256x48xf32> to vector<128x48xf32>
    %cst_29 = arith.constant dense<0.000000e+00> : vector<48xf32>
    %82 = vector.multi_reduction <add>, %81, %cst_29 [0] : vector<128x48xf32> to vector<48xf32>
    %83 = vector.shape_cast %82 : vector<48xf32> to vector<1x48xf32>
    %cst_30 = arith.constant 1.280000e+02 : f32
    %84 = vector.broadcast %cst_30 : f32 to vector<1x48xf32>
    %85 = arith.divf %83, %84 : vector<1x48xf32>
    %86 = vector.broadcast %85 : vector<1x48xf32> to vector<128x48xf32>
    %87 = arith.subf %81, %86 : vector<128x48xf32>
    %88 = arith.mulf %87, %87 : vector<128x48xf32>
    %cst_31 = arith.constant dense<0.000000e+00> : vector<48xf32>
    %89 = vector.multi_reduction <add>, %88, %cst_31 [0] : vector<128x48xf32> to vector<48xf32>
    %90 = vector.shape_cast %89 : vector<48xf32> to vector<1x48xf32>
    %cst_32 = arith.constant 1.280000e+02 : f32
    %91 = vector.broadcast %cst_32 : f32 to vector<1x48xf32>
    %92 = arith.divf %90, %91 : vector<1x48xf32>
    %93 = vector.broadcast %85 : vector<1x48xf32> to vector<128x48xf32>
    %94 = arith.subf %81, %93 : vector<128x48xf32>
    %cst_33 = arith.constant 9.99999974E-6 : f32
    %95 = vector.broadcast %cst_33 : f32 to vector<1x48xf32>
    %96 = arith.addf %92, %95 : vector<1x48xf32>
    %97 = math.rsqrt %96 : vector<1x48xf32>
    %98 = vector.broadcast %97 : vector<1x48xf32> to vector<128x48xf32>
    %99 = arith.mulf %94, %98 : vector<128x48xf32>
    %100 = tpu.concatenate %80, %99 in 0 : vector<128x48xf32>, vector<128x48xf32> -> vector<256x48xf32>
    %c1_34 = arith.constant 1 : index
    %c0_35 = arith.constant 0 : index
    %c0_36 = arith.constant 0 : index
    %101 = vector.load %arg3[%c1_34, %c0_35, %c0_36] : memref<2x1x48xf32, #tpu.memory_space<vmem>>, vector<1x1x48xf32>
    %102 = vector.shape_cast %101 : vector<1x1x48xf32> to vector<1x48xf32>
    %103 = vector.broadcast %102 : vector<1x48xf32> to vector<256x48xf32>
    %104 = arith.mulf %100, %103 : vector<256x48xf32>
    %c1_37 = arith.constant 1 : index
    %c0_38 = arith.constant 0 : index
    %c0_39 = arith.constant 0 : index
    %105 = vector.load %arg4[%c1_37, %c0_38, %c0_39] : memref<2x1x48xf32, #tpu.memory_space<vmem>>, vector<1x1x48xf32>
    %106 = vector.shape_cast %105 : vector<1x1x48xf32> to vector<1x48xf32>
    %107 = vector.broadcast %106 : vector<1x48xf32> to vector<256x48xf32>
    %108 = arith.addf %104, %107 : vector<256x48xf32>
    %109 = vector.extract_strided_slice %108 {offsets = [0, 0], sizes = [256, 24], strides = [1, 1]} : vector<256x48xf32> to vector<256x24xf32>
    %110 = vector.extract_strided_slice %108 {offsets = [0, 24], sizes = [256, 24], strides = [1, 1]} : vector<256x48xf32> to vector<256x24xf32>
    %111 = arith.negf %110 : vector<256x24xf32>
    %112 = math.exp %111 : vector<256x24xf32>
    %cst_40 = arith.constant 1.000000e+00 : f32
    %113 = vector.broadcast %cst_40 : f32 to vector<256x24xf32>
    %114 = arith.addf %113, %112 : vector<256x24xf32>
    %115 = arith.divf %113, %114 : vector<256x24xf32>
    %116 = arith.mulf %109, %115 : vector<256x24xf32>
    %117 = arith.addf %58, %116 : vector<256x24xf32>
    %cst_41 = arith.constant 0.707106769 : f32
    %118 = vector.broadcast %cst_41 : f32 to vector<256x24xf32>
    %119 = arith.mulf %117, %118 : vector<256x24xf32>
    %c0_42 = arith.constant 0 : index
    %c0_43 = arith.constant 0 : index
    %120 = vector.load %arg5[%c0_42, %c0_43] : memref<24x128xf32, #tpu.memory_space<vmem>>, vector<24x128xf32>
    %cst_44 = arith.constant dense<0.000000e+00> : vector<256x128xf32>
    %121 = tpu.matmul %119, %120, %cst_44 {dimension_numbers = #tpu.dot_dimension_numbers<[1], [0], [0], [1], [0, 0, 1, 1], [], []>} : vector<256x24xf32>, vector<24x128xf32>, vector<256x128xf32> -> vector<256x128xf32>
    %c0_45 = arith.constant 0 : index
    %c0_46 = arith.constant 0 : index
    %122 = vector.load %arg6[%c0_45, %c0_46] : memref<256x128xf32, #tpu.memory_space<vmem>>, vector<256x128xf32>
    tpu.vector_store %arg6[%c0_45, %c0_46], %121 {strides = array<i32>} : memref<256x128xf32, #tpu.memory_space<vmem>>, vector<256x128xf32>,
    return
  }
  func.func @transform_0(%arg0: i32) -> (i32, i32) {
    %c0_i32 = arith.constant 0 : i32
    %c0_i32_0 = arith.constant 0 : i32
    return %arg0, %c0_i32 : i32, i32
  }
  func.func @transform_1(%arg0: i32) -> (i32, i32, i32) {
    %c0_i32 = arith.constant 0 : i32
    %c0_i32_0 = arith.constant 0 : i32
    %c0_i32_1 = arith.constant 0 : i32
    %c0_i32_2 = arith.constant 0 : i32
    return %c0_i32, %c0_i32_0, %c0_i32_1 : i32, i32, i32
  }
  func.func @transform_2(%arg0: i32) -> (i32, i32, i32) {
    %c0_i32 = arith.constant 0 : i32
    %c0_i32_0 = arith.constant 0 : i32
    %c0_i32_1 = arith.constant 0 : i32
    %c0_i32_2 = arith.constant 0 : i32
    return %c0_i32, %c0_i32_0, %c0_i32_1 : i32, i32, i32
  }
  func.func @transform_3(%arg0: i32) -> (i32, i32, i32) {
    %c0_i32 = arith.constant 0 : i32
    %c0_i32_0 = arith.constant 0 : i32
    %c0_i32_1 = arith.constant 0 : i32
    %c0_i32_2 = arith.constant 0 : i32
    return %c0_i32, %c0_i32_0, %c0_i32_1 : i32, i32, i32
  }
  func.func @transform_4(%arg0: i32) -> (i32, i32) {
    %c0_i32 = arith.constant 0 : i32
    %c0_i32_0 = arith.constant 0 : i32
    %c0_i32_1 = arith.constant 0 : i32
    return %c0_i32, %c0_i32_0 : i32, i32
  }
  func.func @transform_5(%arg0: i32) -> (i32, i32) {
    %c0_i32 = arith.constant 0 : i32
    %c0_i32_0 = arith.constant 0 : i32
    return %arg0, %c0_i32 : i32, i32
  }
}

</mosaic_0001>

<llo_original>
// kernel: forward.1
$region0: #{forward.1}
  #allocation0 [shape = 'u32[]', space=smem, size = 0x4, offset = 0x4, fixed_abs, tag = 'smem constant byte address 0x4 - core index']
  #allocation1 [shape = 'u32[144,128]{1,0:T(1,128)}', space=vmem, size = 0x12000, scoped, tag = 'internal scratch']
  %s0 = inlined_call_operand.vmem [shape: f32[1024,24], index: 0, kind: input, shape index: {}]
  %s1 = inlined_call_operand.vmem [shape: f32[2,24,48], index: 1, kind: input, shape index: {}]
  %s2 = inlined_call_operand.vmem [shape: f32[2,1,48], index: 2, kind: input, shape index: {}]
  %s3 = inlined_call_operand.vmem [shape: f32[2,1,48], index: 3, kind: input, shape index: {}]
  %s4 = inlined_call_operand.vmem [shape: f32[24,128], index: 4, kind: input, shape index: {}]
  %s5 = inlined_call_operand.vmem [shape: f32[1024,128], index: 5, kind: output, shape index: {}]
  %s6 = sld [smem:[#allocation0]]
  $region53: #{forward.1} parent=0
    _
  %s8 = ssub.s32 1, %s6
  %s9 = scalar_select 0, %s8, %s6
  loop: start=0, step=1, limit=6
  $region2: #{forward.1} parent=0 // loop_pre_header
    _
  $region3: #{forward.1} parent=0 // loop_header
    %s11 = sphi 0, %s15
    %p12 = scmp.ge.s32.totalorder %s11, 6
    %s21 = sphi 0, %s23
    %s24 = sphi 0, %s21
    %s25 = sphi 0, %s24
    %s41 = sphi 0, %s25
    %s45 = sphi 0, %s45
    %s47 = sphi 0, %s45
    %s48 = sphi 0, %s47
    %s62 = sphi 0, %s48
    %s66 = sphi 0, %s66
    %s68 = sphi 0, %s66
    %s69 = sphi 0, %s68
    %s83 = sphi 0, %s69
    %s87 = sphi 0, %s87
    %s89 = sphi 0, %s87
    %s90 = sphi 0, %s89
    %s104 = sphi 0, %s90
    %s108 = sphi 0, %s108
    %s110 = sphi 0, %s108
    %s111 = sphi 0, %s110
    %s125 = sphi 0, %s111
    %s131 = sphi 0, %s133
    %s134 = sphi 0, %s131
    %s135 = sphi 0, %s134
    %s151 = sphi 0, %s135
  $region4: #{forward.1} parent=0 // loop_header_branch
    %14 = sbr.rel (%p12) target = $region8
  $region5: #{forward.1} parent=0 // loop_body
    %s16 = ssub.s32 %s11, 1
    %s17 = ssub.s32 %s11, 2
    %s18 = sadd.s32 %s11, 1
    %s19 = ssub.s32 %s11, %s18
    %p20 = scmp.eq.s32.totalorder %s19, 0
    %s22 = sadd.s32 %s21, 1
    %s23 = scalar_select %p20, %s21, %s22
    %p26 = pneg %p20
    %p27 = scmp.eq.s32.totalorder %s11, 3
    %p28 = por %p26, %p27
    %p29 = scmp.ne.s32.totalorder %s21, %s24
    %p30 = scmp.eq.s32.totalorder %s11, 0
    %p31 = por %p29, %p30
    %p32 = scmp.ne.s32.totalorder %s21, %s24
    %p33 = scmp.eq.s32.totalorder %s16, 3
    %p34 = por %p32, %p33
    %p35 = scmp.ne.s32.totalorder %s24, %s25
    %p36 = scmp.eq.s32.totalorder %s16, 0
    %p37 = por %p35, %p36
    %p38 = scmp.ne.s32.totalorder %s24, %s25
    %p39 = scmp.eq.s32.totalorder %s17, 3
    %p40 = por %p38, %p39
    %p42 = scmp.ne.s32.totalorder %s25, %s41
    %p43 = scmp.eq.s32.totalorder %s17, 0
    %p44 = por %p42, %p43
    %s46 = sadd.s32 %s45, 1
    %p49 = scmp.eq.s32.totalorder %s11, 3
    %p50 = scmp.ne.s32.totalorder %s45, %s47
    %p51 = scmp.eq.s32.totalorder %s11, 0
    %p52 = por %p50, %p51
    %p53 = scmp.ne.s32.totalorder %s45, %s47
    %p54 = scmp.eq.s32.totalorder %s16, 3
    %p55 = por %p53, %p54
    %p56 = scmp.ne.s32.totalorder %s47, %s48
    %p57 = scmp.eq.s32.totalorder %s16, 0
    %p58 = por %p56, %p57
    %p59 = scmp.ne.s32.totalorder %s47, %s48
    %p60 = scmp.eq.s32.totalorder %s17, 3
    %p61 = por %p59, %p60
    %p63 = scmp.ne.s32.totalorder %s48, %s62
    %p64 = scmp.eq.s32.totalorder %s17, 0
    %p65 = por %p63, %p64
    %s67 = sadd.s32 %s66, 1
    %p70 = scmp.eq.s32.totalorder %s11, 3
    %p71 = scmp.ne.s32.totalorder %s66, %s68
    %p72 = scmp.eq.s32.totalorder %s11, 0
    %p73 = por %p71, %p72
    %p74 = scmp.ne.s32.totalorder %s66, %s68
    %p75 = scmp.eq.s32.totalorder %s16, 3
    %p76 = por %p74, %p75
    %p77 = scmp.ne.s32.totalorder %s68, %s69
    %p78 = scmp.eq.s32.totalorder %s16, 0
    %p79 = por %p77, %p78
    %p80 = scmp.ne.s32.totalorder %s68, %s69
    %p81 = scmp.eq.s32.totalorder %s17, 3
    %p82 = por %p80, %p81
    %p84 = scmp.ne.s32.totalorder %s69, %s83
    %p85 = scmp.eq.s32.totalorder %s17, 0
    %p86 = por %p84, %p85
    %s88 = sadd.s32 %s87, 1
    %p91 = scmp.eq.s32.totalorder %s11, 3
    %p92 = scmp.ne.s32.totalorder %s87, %s89
    %p93 = scmp.eq.s32.totalorder %s11, 0
    %p94 = por %p92, %p93
    %p95 = scmp.ne.s32.totalorder %s87, %s89
    %p96 = scmp.eq.s32.totalorder %s16, 3
    %p97 = por %p95, %p96
    %p98 = scmp.ne.s32.totalorder %s89, %s90
    %p99 = scmp.eq.s32.totalorder %s16, 0
    %p100 = por %p98, %p99
    %p101 = scmp.ne.s32.totalorder %s89, %s90
    %p102 = scmp.eq.s32.totalorder %s17, 3
    %p103 = por %p101, %p102
    %p105 = scmp.ne.s32.totalorder %s90, %s104
    %p106 = scmp.eq.s32.totalorder %s17, 0
    %p107 = por %p105, %p106
    %s109 = sadd.s32 %s108, 1
    %p112 = scmp.eq.s32.totalorder %s11, 3
    %p113 = scmp.ne.s32.totalorder %s108, %s110
    %p114 = scmp.eq.s32.totalorder %s11, 0
    %p115 = por %p113, %p114
    %p116 = scmp.ne.s32.totalorder %s108, %s110
    %p117 = scmp.eq.s32.totalorder %s16, 3
    %p118 = por %p116, %p117
    %p119 = scmp.ne.s32.totalorder %s110, %s111
    %p120 = scmp.eq.s32.totalorder %s16, 0
    %p121 = por %p119, %p120
    %p122 = scmp.ne.s32.totalorder %s110, %s111
    %p123 = scmp.eq.s32.totalorder %s17, 3
    %p124 = por %p122, %p123
    %p126 = scmp.ne.s32.totalorder %s111, %s125
    %p127 = scmp.eq.s32.totalorder %s17, 0
    %p128 = por %p126, %p127
    %s129 = ssub.s32 %s11, %s18
    %p130 = scmp.eq.s32.totalorder %s129, 0
    %s132 = sadd.s32 %s131, 1
    %s133 = scalar_select %p130, %s131, %s132
    %p136 = pneg %p130
    %p137 = scmp.eq.s32.totalorder %s11, 3
    %p138 = por %p136, %p137
    %p139 = scmp.ne.s32.totalorder %s131, %s134
    %p140 = scmp.eq.s32.totalorder %s11, 0
    %p141 = por %p139, %p140
    %p142 = scmp.ne.s32.totalorder %s131, %s134
    %p143 = scmp.eq.s32.totalorder %s16, 3
    %p144 = por %p142, %p143
    %p145 = scmp.ne.s32.totalorder %s134, %s135
    %p146 = scmp.eq.s32.totalorder %s16, 0
    %p147 = por %p145, %p146
    %p148 = scmp.ne.s32.totalorder %s134, %s135
    %p149 = scmp.eq.s32.totalorder %s17, 3
    %p150 = por %p148, %p149
    %p152 = scmp.ne.s32.totalorder %s135, %s151
    %p153 = scmp.eq.s32.totalorder %s17, 0
    %p154 = por %p152, %p153
    %p155 = scmp.le.s32.totalorder 1, %s11
    %p156 = scmp.lt.s32.totalorder %s11, 5
    %p157 = pnand %p155, %p156
    %p158 = pneg %p157
    // Predicated region
    $region9: #{forward.1} parent=5 // pred_check
      _
    $region10: #{forward.1} parent=5 // pred_check_branch
      %160 = sbr.rel (%p157) target = $region12
    $region11: #{forward.1} parent=5 // pred_region
      %s161 = ssub.s32 %s11, 1
      // Predicated region
      $region13: #{forward.1} parent=11 // pred_check
        %p162 = pneg %p58
      $region14: #{forward.1} parent=11 // pred_check_branch
        %164 = sbr.rel (%p162) target = $region16
      $region15: #{forward.1} parent=11 // pred_region
        _
      $region16: #{forward.1} parent=11 // pred_fallthru
        _
      // Predicated region
      $region17: #{forward.1} parent=11 // pred_check
        %p165 = pneg %p79
      $region18: #{forward.1} parent=11 // pred_check_branch
        %167 = sbr.rel (%p165) target = $region20
      $region19: #{forward.1} parent=11 // pred_region
        _
      $region20: #{forward.1} parent=11 // pred_fallthru
        _
      // Predicated region
      $region21: #{forward.1} parent=11 // pred_check
        %p168 = pneg %p100
      $region22: #{forward.1} parent=11 // pred_check_branch
        %170 = sbr.rel (%p168) target = $region24
      $region23: #{forward.1} parent=11 // pred_region
        _
      $region24: #{forward.1} parent=11 // pred_fallthru
        _
      // Predicated region
      $region25: #{forward.1} parent=11 // pred_check
        %p171 = pneg %p121
      $region26: #{forward.1} parent=11 // pred_check_branch
        %173 = sbr.rel (%p171) target = $region28
      $region27: #{forward.1} parent=11 // pred_region
        _
      $region28: #{forward.1} parent=11 // pred_fallthru
        _
    $region12: #{forward.1} parent=5 // pred_fallthru
      _
    %p174 = scmp.lt.s32.totalorder %s11, 4
    // Predicated region
    $region29: #{forward.1} parent=5 // pred_check
      %p175 = pneg %p174
    $region30: #{forward.1} parent=5 // pred_check_branch
      %177 = sbr.rel (%p175) target = $region32
    $region31: #{forward.1} parent=5 // pred_region
      // Predicated region
      $region33: #{forward.1} parent=31 // pred_check
        %p178 = pneg %p31
      $region34: #{forward.1} parent=31 // pred_check_branch
        %180 = sbr.rel (%p178) target = $region36
      $region35: #{forward.1} parent=31 // pred_region
        %s181 = smul.u32 32, %s11
        %p182 = scmp.lt.s32.totalorder %s181, 127
        %s183 = scalar_select %p182, %s181, 127
        %s184 = smul.addr %s183, 8
        %s185 = scalar_lea.vmem %s0, %s184
        %s186 = smul.u32 32, %s11
      $region36: #{forward.1} parent=31 // pred_fallthru
        _
    $region32: #{forward.1} parent=5 // pred_fallthru
      _
    %p187 = scmp.le.s32.totalorder 1, %s11
    %p188 = scmp.lt.s32.totalorder %s11, 5
    %p189 = pnand %p187, %p188
    %p190 = pneg %p189
    // Predicated region
    $region37: #{forward.1} parent=5 // pred_check
      _
    $region38: #{forward.1} parent=5 // pred_check_branch
      %192 = sbr.rel (%p189) target = $region40
    $region39: #{forward.1} parent=5 // pred_region
      %s193 = ssub.s32 %s11, 1
      %s194 = smul.u32 32, %s16
      %p195 = scmp.lt.s32.totalorder %s194, 127
      %s196 = scalar_select %p195, %s194, 127
      %s197 = smul.addr %s196, 8
      %s198 = scalar_lea.vmem %s0, %s197
      %p199 = pneg %p37
      %p200 = pneg %p34
      %p201 = pneg %p58
      %p202 = pneg %p55
      %p203 = pneg %p79
      %p204 = pneg %p76
      %p205 = pneg %p100
      %p206 = pneg %p97
      %p207 = pneg %p121
      %p208 = pneg %p118
      %p209 = pneg %p147
      %p210 = pneg %p144
      %s211 = smul.u32 32, %s16
      %p212 = scmp.lt.s32.totalorder %s211, 127
      %s213 = scalar_select %p212, %s211, 127
      %s214 = smul.addr %s213, 8
      %s215 = scalar_lea.vmem %s5, %s214
      %s216 = smul.u32 32, %s16
      %p217 = scmp.lt.s32.totalorder %s216, 127
      %s218 = scalar_select %p217, %s216, 127
      %s219 = smul.addr %s218, 8
      %s220 = scalar_lea.vmem %s0, %s219
      %s221 = smul.u32 32, %s16
      %s222 = smul.u32 32, %s16
      %p223 = scmp.lt.s32.totalorder %s222, 127
      %s224 = scalar_select %p223, %s222, 127
      %s225 = smul.addr %s224, 8
      %s226 = scalar_lea.vmem %s5, %s225
      %s227 = smul.u32 32, %s16
      %v228 = vld [vmem:[%s220] sm:$0xff]
      %v229 = vld [vmem:[%s220 + $0x8] sm:$0xff]
      %v230 = vld [vmem:[%s220 + $0x10] sm:$0xff]
      %v231 = vld [vmem:[%s220 + $0x18] sm:$0xff]
      %v232 = vld [vmem:[%s220 + $0x20] sm:$0xff]
      %v233 = vld [vmem:[%s220 + $0x28] sm:$0xff]
      %v234 = vld [vmem:[%s220 + $0x30] sm:$0xff]
      %v235 = vld [vmem:[%s220 + $0x38] sm:$0xff]
      %v236 = vld [vmem:[%s220 + $0x40] sm:$0xff]
      %v237 = vld [vmem:[%s220 + $0x48] sm:$0xff]
      %v238 = vld [vmem:[%s220 + $0x50] sm:$0xff]
      %v239 = vld [vmem:[%s220 + $0x58] sm:$0xff]
      %v240 = vld [vmem:[%s220 + $0x60] sm:$0xff]
      %v241 = vld [vmem:[%s220 + $0x68] sm:$0xff]
      %v242 = vld [vmem:[%s220 + $0x70] sm:$0xff]
      %v243 = vld [vmem:[%s220 + $0x78] sm:$0xff]
      %v244 = vld [vmem:[%s220 + $0x80] sm:$0xff]
      %v245 = vld [vmem:[%s220 + $0x88] sm:$0xff]
      %v246 = vld [vmem:[%s220 + $0x90] sm:$0xff]
      %v247 = vld [vmem:[%s220 + $0x98] sm:$0xff]
      %v248 = vld [vmem:[%s220 + $0xa0] sm:$0xff]
      %v249 = vld [vmem:[%s220 + $0xa8] sm:$0xff]
      %v250 = vld [vmem:[%s220 + $0xb0] sm:$0xff]
      %v251 = vld [vmem:[%s220 + $0xb8] sm:$0xff]
      %v252 = vld [vmem:[%s220 + $0xc0] sm:$0xff]
      %v253 = vld [vmem:[%s220 + $0xc8] sm:$0xff]
      %v254 = vld [vmem:[%s220 + $0xd0] sm:$0xff]
      %v255 = vld [vmem:[%s220 + $0xd8] sm:$0xff]
      %v256 = vld [vmem:[%s220 + $0xe0] sm:$0xff]
      %v257 = vld [vmem:[%s220 + $0xe8] sm:$0xff]
      %v258 = vld [vmem:[%s220 + $0xf0] sm:$0xff]
      %v259 = vld [vmem:[%s220 + $0xf8] sm:$0xff]
      %v260 = vld [vmem:[%s1] sm:$0xff]
      %v261 = vld [vmem:[%s1 + $0x8] sm:$0xff]
      %v262 = vld [vmem:[%s1 + $0x10] sm:$0xff]
      %vm263 = vcmask 195584
      %v265 = vsel %vm263, %v228, 0
      %v268 = vsel %vm263, %v229, 0
      %v271 = vsel %vm263, %v230, 0
      %v274 = vsel %vm263, %v231, 0
      %v277 = vsel %vm263, %v232, 0
      %v280 = vsel %vm263, %v233, 0
      %v283 = vsel %vm263, %v234, 0
      %v286 = vsel %vm263, %v235, 0
      %v289 = vsel %vm263, %v236, 0
      %v292 = vsel %vm263, %v237, 0
      %v295 = vsel %vm263, %v238, 0
      %v298 = vsel %vm263, %v239, 0
      %v301 = vsel %vm263, %v240, 0
      %v304 = vsel %vm263, %v241, 0
      %v307 = vsel %vm263, %v242, 0
      %v310 = vsel %vm263, %v243, 0
      %v313 = vsel %vm263, %v244, 0
      %v316 = vsel %vm263, %v245, 0
      %v319 = vsel %vm263, %v246, 0
      %v322 = vsel %vm263, %v247, 0
      %v325 = vsel %vm263, %v248, 0
      %v328 = vsel %vm263, %v249, 0
      %v331 = vsel %vm263, %v250, 0
      %v334 = vsel %vm263, %v251, 0
      %v337 = vsel %vm263, %v252, 0
      %v340 = vsel %vm263, %v253, 0
      %v343 = vsel %vm263, %v254, 0
      %v346 = vsel %vm263, %v255, 0
      %v349 = vsel %vm263, %v256, 0
      %v352 = vsel %vm263, %v257, 0
      %v355 = vsel %vm263, %v258, 0
      %v358 = vsel %vm263, %v259, 0
      %360 = vmatprep.subr.mxu0 0.0
      %361 = vmatpush1.msra.mxu0 %v260
      %362 = vmatprep.subr.mxu0 0.0
      %363 = vmatpush1.msra.mxu0 %v261
      %364 = vmatprep.subr.mxu0 0.0
      %365 = vmatpush1.msra.mxu0 %v262
      %366 = vmatprep.subr.mxu0 0.0
      %367 = vmatpush1.msra.mxu0 0.0
      %368 = vmatprep.subr.mxu0 0.0
      %369 = vmatpush1.msra.mxu0 0.0
      %370 = vmatprep.subr.mxu0 0.0
      %371 = vmatpush1.msra.mxu0 0.0
      %372 = vmatprep.subr.mxu0 0.0
      %373 = vmatpush1.msra.mxu0 0.0
      %374 = vmatprep.subr.mxu0 0.0
      %375 = vmatpush1.msra.mxu0 0.0
      %376 = vmatprep.subr.mxu0 0.0
      %377 = vmatpush1.msra.mxu0 0.0
      %378 = vmatprep.subr.mxu0 0.0
      %379 = vmatpush1.msra.mxu0 0.0
      %380 = vmatprep.subr.mxu0 0.0
      %381 = vmatpush1.msra.mxu0 0.0
      %382 = vmatprep.subr.mxu0 0.0
      %383 = vmatpush1.msra.mxu0 0.0
      %384 = vmatprep.subr.mxu0 0.0
      %385 = vmatpush1.msra.mxu0 0.0
      %386 = vmatprep.subr.mxu0 0.0
      %387 = vmatpush1.msra.mxu0 0.0
      %388 = vmatprep.subr.mxu0 0.0
      %389 = vmatpush1.msra.mxu0 0.0
      %390 = vmatprep.subr.mxu0 0.0
      %391 = vmatpush1.msra.mxu0 0.0
      %392 = vmatprep.subr.mxu0 0.0
      %393 = vmatpush1.msra.mxu0 0.0
      %394 = vmatprep.subr.mxu0 0.0
      %395 = vmatpush1.msra.mxu0 0.0
      %396 = vmatprep.subr.mxu0 0.0
      %397 = vmatpush1.msra.mxu0 0.0
      %398 = vmatprep.subr.mxu0 0.0
      %399 = vmatpush1.msra.mxu0 0.0
      %400 = vmatprep.subr.mxu0 0.0
      %401 = vmatpush1.msra.mxu0 0.0
      %402 = vmatprep.subr.mxu0 0.0
      %403 = vmatpush1.msra.mxu0 0.0
      %404 = vmatprep.subr.mxu0 0.0
      %405 = vmatpush1.msra.mxu0 0.0
      %406 = vmatprep.subr.mxu0 0.0
      %407 = vmatpush1.msra.mxu0 0.0
      %408 = vmatprep.subr.mxu0 0.0
      %409 = vmatpush1.msra.mxu0 0.0
      %410 = vmatprep.subr.mxu0 0.0
      %411 = vmatpush1.msra.mxu0 0.0
      %412 = vmatprep.subr.mxu0 0.0
      %413 = vmatpush1.msra.mxu0 0.0
      %414 = vmatprep.subr.mxu0 0.0
      %415 = vmatpush1.msra.mxu0 0.0
      %416 = vmatprep.subr.mxu0 0.0
      %417 = vmatpush1.msra.mxu0 0.0
      %418 = vmatprep.subr.mxu0 0.0
      %419 = vmatpush1.msra.mxu0 0.0
      %420 = vmatprep.subr.mxu0 0.0
      %421 = vmatpush1.msra.mxu0 0.0
      %422 = vmatprep.subr.mxu0 0.0
      %423 = vmatpush1.msra.mxu0 0.0
      %424 = vmatprep.mubr.f32.mxu0 0.0
      %425 = vmatmul.mubr.f32.gmra.mrb[0].mxu0 %v265
      %v426 = vpop.f32.mrb[0].mxu0
      %v427 = vadd.f32 0.0, %v426
      %v428 = vpop.f32.mrb[0].mxu0
      %429 = vmatprep.mubr.f32.mxu0 0.0
      %430 = vmatmul.mubr.f32.gmra.mrb[0].mxu0 %v268
      %v431 = vpop.f32.mrb[0].mxu0
      %v432 = vadd.f32 0.0, %v431
      %v433 = vpop.f32.mrb[0].mxu0
      %434 = vmatprep.mubr.f32.mxu0 0.0
      %435 = vmatmul.mubr.f32.gmra.mrb[0].mxu0 %v271
      %v436 = vpop.f32.mrb[0].mxu0
      %v437 = vadd.f32 0.0, %v436
      %v438 = vpop.f32.mrb[0].mxu0
      %439 = vmatprep.mubr.f32.mxu0 0.0
      %440 = vmatmul.mubr.f32.gmra.mrb[0].mxu0 %v274
      %v441 = vpop.f32.mrb[0].mxu0
      %v442 = vadd.f32 0.0, %v441
      %v443 = vpop.f32.mrb[0].mxu0
      %444 = vmatprep.mubr.f32.mxu0 0.0
      %445 = vmatmul.mubr.f32.gmra.mrb[0].mxu0 %v277
      %v446 = vpop.f32.mrb[0].mxu0
      %v447 = vadd.f32 0.0, %v446
      %v448 = vpop.f32.mrb[0].mxu0
      %449 = vmatprep.mubr.f32.mxu0 0.0
      %450 = vmatmul.mubr.f32.gmra.mrb[0].mxu0 %v280
      %v451 = vpop.f32.mrb[0].mxu0
      %v452 = vadd.f32 0.0, %v451
      %v453 = vpop.f32.mrb[0].mxu0
      %454 = vmatprep.mubr.f32.mxu0 0.0
      %455 = vmatmul.mubr.f32.gmra.mrb[0].mxu0 %v283
      %v456 = vpop.f32.mrb[0].mxu0
      %v457 = vadd.f32 0.0, %v456
      %v458 = vpop.f32.mrb[0].mxu0
      %459 = vmatprep.mubr.f32.mxu0 0.0
      %460 = vmatmul.mubr.f32.gmra.mrb[0].mxu0 %v286
      %v461 = vpop.f32.mrb[0].mxu0
      %v462 = vadd.f32 0.0, %v461
      %v463 = vpop.f32.mrb[0].mxu0
      %464 = vmatprep.mubr.f32.mxu0 0.0
      %465 = vmatmul.mubr.f32.gmra.mrb[0].mxu0 %v289
      %v466 = vpop.f32.mrb[0].mxu0
      %v467 = vadd.f32 0.0, %v466
      %v468 = vpop.f32.mrb[0].mxu0
      %469 = vmatprep.mubr.f32.mxu0 0.0
      %470 = vmatmul.mubr.f32.gmra.mrb[0].mxu0 %v292
      %v471 = vpop.f32.mrb[0].mxu0
      %v472 = vadd.f32 0.0, %v471
      %v473 = vpop.f32.mrb[0].mxu0
      %474 = vmatprep.mubr.f32.mxu0 0.0
      %475 = vmatmul.mubr.f32.gmra.mrb[0].mxu0 %v295
      %v476 = vpop.f32.mrb[0].mxu0
      %v477 = vadd.f32 0.0, %v476
      %v478 = vpop.f32.mrb[0].mxu0
      %479 = vmatprep.mubr.f32.mxu0 0.0
      %480 = vmatmul.mubr.f32.gmra.mrb[0].mxu0 %v298
      %v481 = vpop.f32.mrb[0].mxu0
      %v482 = vadd.f32 0.0, %v481
      %v483 = vpop.f32.mrb[0].mxu0
      %484 = vmatprep.mubr.f32.mxu0 0.0
      %485 = vmatmul.mubr.f32.gmra.mrb[0].mxu0 %v301
      %v486 = vpop.f32.mrb[0].mxu0
      %v487 = vadd.f32 0.0, %v486
      %v488 = vpop.f32.mrb[0].mxu0
      %489 = vmatprep.mubr.f32.mxu0 0.0
      %490 = vmatmul.mubr.f32.gmra.mrb[0].mxu0 %v304
      %v491 = vpop.f32.mrb[0].mxu0
      %v492 = vadd.f32 0.0, %v491
      %v493 = vpop.f32.mrb[0].mxu0
      %494 = vmatprep.mubr.f32.mxu0 0.0
      %495 = vmatmul.mubr.f32.gmra.mrb[0].mxu0 %v307
      %v496 = vpop.f32.mrb[0].mxu0
      %v497 = vadd.f32 0.0, %v496
      %v498 = vpop.f32.mrb[0].mxu0
      %499 = vmatprep.mubr.f32.mxu0 0.0
      %500 = vmatmul.mubr.f32.gmra.mrb[0].mxu0 %v310
      %v501 = vpop.f32.mrb[0].mxu0
      %v502 = vadd.f32 0.0, %v501
      %v503 = vpop.f32.mrb[0].mxu0
      %504 = vmatprep.mubr.f32.mxu0 0.0
      %505 = vmatmul.mubr.f32.gmra.mrb[0].mxu0 %v313
      %v506 = vpop.f32.mrb[0].mxu0
      %v507 = vadd.f32 0.0, %v506
      %v508 = vpop.f32.mrb[0].mxu0
      %509 = vmatprep.mubr.f32.mxu0 0.0
      %510 = vmatmul.mubr.f32.gmra.mrb[0].mxu0 %v316
      %v511 = vpop.f32.mrb[0].mxu0
      %v512 = vadd.f32 0.0, %v511
      %v513 = vpop.f32.mrb[0].mxu0
      %514 = vmatprep.mubr.f32.mxu0 0.0
      %515 = vmatmul.mubr.f32.gmra.mrb[0].mxu0 %v319
      %v516 = vpop.f32.mrb[0].mxu0
      %v517 = vadd.f32 0.0, %v516
      %v518 = vpop.f32.mrb[0].mxu0
      %519 = vmatprep.mubr.f32.mxu0 0.0
      %520 = vmatmul.mubr.f32.gmra.mrb[0].mxu0 %v322
      %v521 = vpop.f32.mrb[0].mxu0
      %v522 = vadd.f32 0.0, %v521
      %v523 = vpop.f32.mrb[0].mxu0
      %524 = vmatprep.mubr.f32.mxu0 0.0
      %525 = vmatmul.mubr.f32.gmra.mrb[0].mxu0 %v325
      %v526 = vpop.f32.mrb[0].mxu0
      %v527 = vadd.f32 0.0, %v526
      %v528 = vpop.f32.mrb[0].mxu0
      %529 = vmatprep.mubr.f32.mxu0 0.0
      %530 = vmatmul.mubr.f32.gmra.mrb[0].mxu0 %v328
      %v531 = vpop.f32.mrb[0].mxu0
      %v532 = vadd.f32 0.0, %v531
      %v533 = vpop.f32.mrb[0].mxu0
      %534 = vmatprep.mubr.f32.mxu0 0.0
      %535 = vmatmul.mubr.f32.gmra.mrb[0].mxu0 %v331
      %v536 = vpop.f32.mrb[0].mxu0
      %v537 = vadd.f32 0.0, %v536
      %v538 = vpop.f32.mrb[0].mxu0
      %539 = vmatprep.mubr.f32.mxu0 0.0
      %540 = vmatmul.mubr.f32.gmra.mrb[0].mxu0 %v334
      %v541 = vpop.f32.mrb[0].mxu0
      %v542 = vadd.f32 0.0, %v541
      %v543 = vpop.f32.mrb[0].mxu0
      %544 = vmatprep.mubr.f32.mxu0 0.0
      %545 = vmatmul.mubr.f32.gmra.mrb[0].mxu0 %v337
      %v546 = vpop.f32.mrb[0].mxu0
      %v547 = vadd.f32 0.0, %v546
      %v548 = vpop.f32.mrb[0].mxu0
      %549 = vmatprep.mubr.f32.mxu0 0.0
      %550 = vmatmul.mubr.f32.gmra.mrb[0].mxu0 %v340
      %v551 = vpop.f32.mrb[0].mxu0
      %v552 = vadd.f32 0.0, %v551
      %v553 = vpop.f32.mrb[0].mxu0
      %554 = vmatprep.mubr.f32.mxu0 0.0
      %555 = vmatmul.mubr.f32.gmra.mrb[0].mxu0 %v343
      %v556 = vpop.f32.mrb[0].mxu0
      %v557 = vadd.f32 0.0, %v556
      %v558 = vpop.f32.mrb[0].mxu0
      %559 = vmatprep.mubr.f32.mxu0 0.0
      %560 = vmatmul.mubr.f32.gmra.mrb[0].mxu0 %v346
      %v561 = vpop.f32.mrb[0].mxu0
      %v562 = vadd.f32 0.0, %v561
      %v563 = vpop.f32.mrb[0].mxu0
      %564 = vmatprep.mubr.f32.mxu0 0.0
      %565 = vmatmul.mubr.f32.gmra.mrb[0].mxu0 %v349
      %v566 = vpop.f32.mrb[0].mxu0
      %v567 = vadd.f32 0.0, %v566
      %v568 = vpop.f32.mrb[0].mxu0
      %569 = vmatprep.mubr.f32.mxu0 0.0
      %570 = vmatmul.mubr.f32.gmra.mrb[0].mxu0 %v352
      %v571 = vpop.f32.mrb[0].mxu0
      %v572 = vadd.f32 0.0, %v571
      %v573 = vpop.f32.mrb[0].mxu0
      %574 = vmatprep.mubr.f32.mxu0 0.0
      %575 = vmatmul.mubr.f32.gmra.mrb[0].mxu0 %v355
      %v576 = vpop.f32.mrb[0].mxu0
      %v577 = vadd.f32 0.0, %v576
      %v578 = vpop.f32.mrb[0].mxu0
      %579 = vmatprep.mubr.f32.mxu0 0.0
      %580 = vmatmul.mubr.f32.gmra.mrb[0].mxu0 %v358
      %v581 = vpop.f32.mrb[0].mxu0
      %v582 = vadd.f32 0.0, %v581
      %v583 = vpop.f32.mrb[0].mxu0
      %584 = vdwg.mxu0
      %vm585 = vcmask 392192
      %v586 = vsel %vm585, %v427, 0.0
      %v587 = vsel %vm585, %v432, 0.0
      %v588 = vadd.f32 %v586, %v587
      %v589 = vsel %vm585, %v437, 0.0
      %v590 = vadd.f32 %v588, %v589
      %v591 = vsel %vm585, %v442, 0.0
      %v592 = vadd.f32 %v590, %v591
      %v593 = vsel %vm585, %v447, 0.0
      %v594 = vadd.f32 %v592, %v593
      %v595 = vsel %vm585, %v452, 0.0
      %v596 = vadd.f32 %v594, %v595
      %v597 = vsel %vm585, %v457, 0.0
      %v598 = vadd.f32 %v596, %v597
      %v599 = vsel %vm585, %v462, 0.0
      %v600 = vadd.f32 %v598, %v599
      %v601 = vsel %vm585, %v467, 0.0
      %v602 = vadd.f32 %v600, %v601
      %v603 = vsel %vm585, %v472, 0.0
      %v604 = vadd.f32 %v602, %v603
      %v605 = vsel %vm585, %v477, 0.0
      %v606 = vadd.f32 %v604, %v605
      %v607 = vsel %vm585, %v482, 0.0
      %v608 = vadd.f32 %v606, %v607
      %v609 = vsel %vm585, %v487, 0.0
      %v610 = vadd.f32 %v608, %v609
      %v611 = vsel %vm585, %v492, 0.0
      %v612 = vadd.f32 %v610, %v611
      %v613 = vsel %vm585, %v497, 0.0
      %v614 = vadd.f32 %v612, %v613
      %v615 = vsel %vm585, %v502, 0.0
      %v616 = vadd.f32 %v614, %v615
      %v617 = vrot.slane %v616, 4
      %v618 = vadd.f32 %v616, %v617
      %v619 = vrot.slane %v618, 2
      %v620 = vadd.f32 %v618, %v619
      %v621 = vrot.slane %v620, 1
      %v622 = vadd.f32 %v620, %v621
      %v623 = vrcp.pop 128.0
      %v624 = vmul.f32 %v622, %v623
      %v625 = vsub.f32 %v427, %v624
      %v626 = vsub.f32 %v432, %v624
      %v627 = vsub.f32 %v437, %v624
      %v628 = vsub.f32 %v442, %v624
      %v629 = vsub.f32 %v447, %v624
      %v630 = vsub.f32 %v452, %v624
      %v631 = vsub.f32 %v457, %v624
      %v632 = vsub.f32 %v462, %v624
      %v633 = vsub.f32 %v467, %v624
      %v634 = vsub.f32 %v472, %v624
      %v635 = vsub.f32 %v477, %v624
      %v636 = vsub.f32 %v482, %v624
      %v637 = vsub.f32 %v487, %v624
      %v638 = vsub.f32 %v492, %v624
      %v639 = vsub.f32 %v497, %v624
      %v640 = vsub.f32 %v502, %v624
      %v641 = vmul.f32 %v625, %v625
      %v642 = vmul.f32 %v626, %v626
      %v643 = vmul.f32 %v627, %v627
      %v644 = vmul.f32 %v628, %v628
      %v645 = vmul.f32 %v629, %v629
      %v646 = vmul.f32 %v630, %v630
      %v647 = vmul.f32 %v631, %v631
      %v648 = vmul.f32 %v632, %v632
      %v649 = vmul.f32 %v633, %v633
      %v650 = vmul.f32 %v634, %v634
      %v651 = vmul.f32 %v635, %v635
      %v652 = vmul.f32 %v636, %v636
      %v653 = vmul.f32 %v637, %v637
      %v654 = vmul.f32 %v638, %v638
      %v655 = vmul.f32 %v639, %v639
      %v656 = vmul.f32 %v640, %v640
      %v657 = vsel %vm585, %v641, 0.0
      %v658 = vsel %vm585, %v642, 0.0
      %v659 = vadd.f32 %v657, %v658
      %v660 = vsel %vm585, %v643, 0.0
      %v661 = vadd.f32 %v659, %v660
      %v662 = vsel %vm585, %v644, 0.0
      %v663 = vadd.f32 %v661, %v662
      %v664 = vsel %vm585, %v645, 0.0
      %v665 = vadd.f32 %v663, %v664
      %v666 = vsel %vm585, %v646, 0.0
      %v667 = vadd.f32 %v665, %v666
      %v668 = vsel %vm585, %v647, 0.0
      %v669 = vadd.f32 %v667, %v668
      %v670 = vsel %vm585, %v648, 0.0
      %v671 = vadd.f32 %v669, %v670
      %v672 = vsel %vm585, %v649, 0.0
      %v673 = vadd.f32 %v671, %v672
      %v674 = vsel %vm585, %v650, 0.0
      %v675 = vadd.f32 %v673, %v674
      %v676 = vsel %vm585, %v651, 0.0
      %v677 = vadd.f32 %v675, %v676
      %v678 = vsel %vm585, %v652, 0.0
      %v679 = vadd.f32 %v677, %v678
      %v680 = vsel %vm585, %v653, 0.0
      %v681 = vadd.f32 %v679, %v680
      %v682 = vsel %vm585, %v654, 0.0
      %v683 = vadd.f32 %v681, %v682
      %v684 = vsel %vm585, %v655, 0.0
      %v685 = vadd.f32 %v683, %v684
      %v686 = vsel %vm585, %v656, 0.0
      %v687 = vadd.f32 %v685, %v686
      %v688 = vrot.slane %v687, 4
      %v689 = vadd.f32 %v687, %v688
      %v690 = vrot.slane %v689, 2
      %v691 = vadd.f32 %v689, %v690
      %v692 = vrot.slane %v691, 1
      %v693 = vadd.f32 %v691, %v692
      %v694 = vmul.f32 %v693, %v623
      %v695 = vadd.f32 %v694, 1e-05
      %v696 = vrsqrt.pop %v695
      %v697 = vmul.f32 %v625, %v696
      %v698 = vmul.f32 %v626, %v696
      %v699 = vmul.f32 %v627, %v696
      %v700 = vmul.f32 %v628, %v696
      %v701 = vmul.f32 %v629, %v696
      %v702 = vmul.f32 %v630, %v696
      %v703 = vmul.f32 %v631, %v696
      %v704 = vmul.f32 %v632, %v696
      %v705 = vmul.f32 %v633, %v696
      %v706 = vmul.f32 %v634, %v696
      %v707 = vmul.f32 %v635, %v696
      %v708 = vmul.f32 %v636, %v696
      %v709 = vmul.f32 %v637, %v696
      %v710 = vmul.f32 %v638, %v696
      %v711 = vmul.f32 %v639, %v696
      %v712 = vmul.f32 %v640, %v696
      %v713 = vsel %vm585, %v507, 0.0
      %v714 = vsel %vm585, %v512, 0.0
      %v715 = vadd.f32 %v713, %v714
      %v716 = vsel %vm585, %v517, 0.0
      %v717 = vadd.f32 %v715, %v716
      %v718 = vsel %vm585, %v522, 0.0
      %v719 = vadd.f32 %v717, %v718
      %v720 = vsel %vm585, %v527, 0.0
      %v721 = vadd.f32 %v719, %v720
      %v722 = vsel %vm585, %v532, 0.0
      %v723 = vadd.f32 %v721, %v722
      %v724 = vsel %vm585, %v537, 0.0
      %v725 = vadd.f32 %v723, %v724
      %v726 = vsel %vm585, %v542, 0.0
      %v727 = vadd.f32 %v725, %v726
      %v728 = vsel %vm585, %v547, 0.0
      %v729 = vadd.f32 %v727, %v728
      %v730 = vsel %vm585, %v552, 0.0
      %v731 = vadd.f32 %v729, %v730
      %v732 = vsel %vm585, %v557, 0.0
      %v733 = vadd.f32 %v731, %v732
      %v734 = vsel %vm585, %v562, 0.0
      %v735 = vadd.f32 %v733, %v734
      %v736 = vsel %vm585, %v567, 0.0
      %v737 = vadd.f32 %v735, %v736
      %v738 = vsel %vm585, %v572, 0.0
      %v739 = vadd.f32 %v737, %v738
      %v740 = vsel %vm585, %v577, 0.0
      %v741 = vadd.f32 %v739, %v740
      %v742 = vsel %vm585, %v582, 0.0
      %v743 = vadd.f32 %v741, %v742
      %v744 = vrot.slane %v743, 4
      %v745 = vadd.f32 %v743, %v744
      %v746 = vrot.slane %v745, 2
      %v747 = vadd.f32 %v745, %v746
      %v748 = vrot.slane %v747, 1
      %v749 = vadd.f32 %v747, %v748
      %v750 = vmul.f32 %v749, %v623
      %v751 = vsub.f32 %v507, %v750
      %v752 = vsub.f32 %v512, %v750
      %v753 = vsub.f32 %v517, %v750
      %v754 = vsub.f32 %v522, %v750
      %v755 = vsub.f32 %v527, %v750
      %v756 = vsub.f32 %v532, %v750
      %v757 = vsub.f32 %v537, %v750
      %v758 = vsub.f32 %v542, %v750
      %v759 = vsub.f32 %v547, %v750
      %v760 = vsub.f32 %v552, %v750
      %v761 = vsub.f32 %v557, %v750
      %v762 = vsub.f32 %v562, %v750
      %v763 = vsub.f32 %v567, %v750
      %v764 = vsub.f32 %v572, %v750
      %v765 = vsub.f32 %v577, %v750
      %v766 = vsub.f32 %v582, %v750
      %v767 = vmul.f32 %v751, %v751
      %v768 = vmul.f32 %v752, %v752
      %v769 = vmul.f32 %v753, %v753
      %v770 = vmul.f32 %v754, %v754
      %v771 = vmul.f32 %v755, %v755
      %v772 = vmul.f32 %v756, %v756
      %v773 = vmul.f32 %v757, %v757
      %v774 = vmul.f32 %v758, %v758
      %v775 = vmul.f32 %v759, %v759
      %v776 = vmul.f32 %v760, %v760
      %v777 = vmul.f32 %v761, %v761
      %v778 = vmul.f32 %v762, %v762
      %v779 = vmul.f32 %v763, %v763
      %v780 = vmul.f32 %v764, %v764
      %v781 = vmul.f32 %v765, %v765
      %v782 = vmul.f32 %v766, %v766
      %v783 = vsel %vm585, %v767, 0.0
      %v784 = vsel %vm585, %v768, 0.0
      %v785 = vadd.f32 %v783, %v784
      %v786 = vsel %vm585, %v769, 0.0
      %v787 = vadd.f32 %v785, %v786
      %v788 = vsel %vm585, %v770, 0.0
      %v789 = vadd.f32 %v787, %v788
      %v790 = vsel %vm585, %v771, 0.0
      %v791 = vadd.f32 %v789, %v790
      %v792 = vsel %vm585, %v772, 0.0
      %v793 = vadd.f32 %v791, %v792
      %v794 = vsel %vm585, %v773, 0.0
      %v795 = vadd.f32 %v793, %v794
      %v796 = vsel %vm585, %v774, 0.0
      %v797 = vadd.f32 %v795, %v796
      %v798 = vsel %vm585, %v775, 0.0
      %v799 = vadd.f32 %v797, %v798
      %v800 = vsel %vm585, %v776, 0.0
      %v801 = vadd.f32 %v799, %v800
      %v802 = vsel %vm585, %v777, 0.0
      %v803 = vadd.f32 %v801, %v802
      %v804 = vsel %vm585, %v778, 0.0
      %v805 = vadd.f32 %v803, %v804
      %v806 = vsel %vm585, %v779, 0.0
      %v807 = vadd.f32 %v805, %v806
      %v808 = vsel %vm585, %v780, 0.0
      %v809 = vadd.f32 %v807, %v808
      %v810 = vsel %vm585, %v781, 0.0
      %v811 = vadd.f32 %v809, %v810
      %v812 = vsel %vm585, %v782, 0.0
      %v813 = vadd.f32 %v811, %v812
      %v814 = vrot.slane %v813, 4
      %v815 = vadd.f32 %v813, %v814
      %v816 = vrot.slane %v815, 2
      %v817 = vadd.f32 %v815, %v816
      %v818 = vrot.slane %v817, 1
      %v819 = vadd.f32 %v817, %v818
      %v820 = vmul.f32 %v819, %v623
      %v821 = vadd.f32 %v820, 1e-05
      %v822 = vrsqrt.pop %v821
      %v823 = vmul.f32 %v751, %v822
      %v824 = vmul.f32 %v752, %v822
      %v825 = vmul.f32 %v753, %v822
      %v826 = vmul.f32 %v754, %v822
      %v827 = vmul.f32 %v755, %v822
      %v828 = vmul.f32 %v756, %v822
      %v829 = vmul.f32 %v757, %v822
      %v830 = vmul.f32 %v758, %v822
      %v831 = vmul.f32 %v759, %v822
      %v832 = vmul.f32 %v760, %v822
      %v833 = vmul.f32 %v761, %v822
      %v834 = vmul.f32 %v762, %v822
      %v835 = vmul.f32 %v763, %v822
      %v836 = vmul.f32 %v764, %v822
      %v837 = vmul.f32 %v765, %v822
      %v838 = vmul.f32 %v766, %v822
      %v839 = vld [vmem:[%s2] sm:$0x1]
      %v841 = vlaneseq
      %v842 = vshrl.u32 %v841, 7
      %v843 = vsub.s32 0, %v842
      %v844 = vrot.slane %v839, %v843
      %v846 = vmul.f32 %v697, %v844
      %v847 = vmul.f32 %v698, %v844
      %v848 = vmul.f32 %v699, %v844
      %v849 = vmul.f32 %v700, %v844
      %v850 = vmul.f32 %v701, %v844
      %v851 = vmul.f32 %v702, %v844
      %v852 = vmul.f32 %v703, %v844
      %v853 = vmul.f32 %v704, %v844
      %v854 = vmul.f32 %v705, %v844
      %v855 = vmul.f32 %v706, %v844
      %v856 = vmul.f32 %v707, %v844
      %v857 = vmul.f32 %v708, %v844
      %v858 = vmul.f32 %v709, %v844
      %v859 = vmul.f32 %v710, %v844
      %v860 = vmul.f32 %v711, %v844
      %v861 = vmul.f32 %v712, %v844
      %v862 = vmul.f32 %v823, %v844
      %v863 = vmul.f32 %v824, %v844
      %v864 = vmul.f32 %v825, %v844
      %v865 = vmul.f32 %v826, %v844
      %v866 = vmul.f32 %v827, %v844
      %v867 = vmul.f32 %v828, %v844
      %v868 = vmul.f32 %v829, %v844
      %v869 = vmul.f32 %v830, %v844
      %v870 = vmul.f32 %v831, %v844
      %v871 = vmul.f32 %v832, %v844
      %v872 = vmul.f32 %v833, %v844
      %v873 = vmul.f32 %v834, %v844
      %v874 = vmul.f32 %v835, %v844
      %v875 = vmul.f32 %v836, %v844
      %v876 = vmul.f32 %v837, %v844
      %v877 = vmul.f32 %v838, %v844
      %v878 = vld [vmem:[%s3] sm:$0x1]
      %v880 = vlaneseq
      %v881 = vshrl.u32 %v880, 7
      %v882 = vsub.s32 0, %v881
      %v883 = vrot.slane %v878, %v882
      %v885 = vadd.f32 %v846, %v883
      %v886 = vadd.f32 %v847, %v883
      %v887 = vadd.f32 %v848, %v883
      %v888 = vadd.f32 %v849, %v883
      %v889 = vadd.f32 %v850, %v883
      %v890 = vadd.f32 %v851, %v883
      %v891 = vadd.f32 %v852, %v883
      %v892 = vadd.f32 %v853, %v883
      %v893 = vadd.f32 %v854, %v883
      %v894 = vadd.f32 %v855, %v883
      %v895 = vadd.f32 %v856, %v883
      %v896 = vadd.f32 %v857, %v883
      %v897 = vadd.f32 %v858, %v883
      %v898 = vadd.f32 %v859, %v883
      %v899 = vadd.f32 %v860, %v883
      %v900 = vadd.f32 %v861, %v883
      %v901 = vadd.f32 %v862, %v883
      %v902 = vadd.f32 %v863, %v883
      %v903 = vadd.f32 %v864, %v883
      %v904 = vadd.f32 %v865, %v883
      %v905 = vadd.f32 %v866, %v883
      %v906 = vadd.f32 %v867, %v883
      %v907 = vadd.f32 %v868, %v883
      %v908 = vadd.f32 %v869, %v883
      %v909 = vadd.f32 %v870, %v883
      %v910 = vadd.f32 %v871, %v883
      %v911 = vadd.f32 %v872, %v883
      %v912 = vadd.f32 %v873, %v883
      %v913 = vadd.f32 %v874, %v883
      %v914 = vadd.f32 %v875, %v883
      %v915 = vadd.f32 %v876, %v883
      %v916 = vadd.f32 %v877, %v883
      %v917 = vxor.u32 %v885, 2147483648
      %v918 = vxor.u32 %v886, 2147483648
      %v919 = vxor.u32 %v887, 2147483648
      %v920 = vxor.u32 %v888, 2147483648
      %v921 = vxor.u32 %v889, 2147483648
      %v922 = vxor.u32 %v890, 2147483648
      %v923 = vxor.u32 %v891, 2147483648
      %v924 = vxor.u32 %v892, 2147483648
      %v925 = vxor.u32 %v893, 2147483648
      %v926 = vxor.u32 %v894, 2147483648
      %v927 = vxor.u32 %v895, 2147483648
      %v928 = vxor.u32 %v896, 2147483648
      %v929 = vxor.u32 %v897, 2147483648
      %v930 = vxor.u32 %v898, 2147483648
      %v931 = vxor.u32 %v899, 2147483648
      %v932 = vxor.u32 %v900, 2147483648
      %v933 = vxor.u32 %v901, 2147483648
      %v934 = vxor.u32 %v902, 2147483648
      %v935 = vxor.u32 %v903, 2147483648
      %v936 = vxor.u32 %v904, 2147483648
      %v937 = vxor.u32 %v905, 2147483648
      %v938 = vxor.u32 %v906, 2147483648
      %v939 = vxor.u32 %v907, 2147483648
      %v940 = vxor.u32 %v908, 2147483648
      %v941 = vxor.u32 %v909, 2147483648
      %v942 = vxor.u32 %v910, 2147483648
      %v943 = vxor.u32 %v911, 2147483648
      %v944 = vxor.u32 %v912, 2147483648
      %v945 = vxor.u32 %v913, 2147483648
      %v946 = vxor.u32 %v914, 2147483648
      %v947 = vxor.u32 %v915, 2147483648
      %v948 = vxor.u32 %v916, 2147483648
      %v949 = vmul.f32 %v917, 1.442695
      %v950 = vpow.pop %v949
      %v951 = vmul.f32 %v918, 1.442695
      %v952 = vpow.pop %v951
      %v953 = vmul.f32 %v919, 1.442695
      %v954 = vpow.pop %v953
      %v955 = vmul.f32 %v920, 1.442695
      %v956 = vpow.pop %v955
      %v957 = vmul.f32 %v921, 1.442695
      %v958 = vpow.pop %v957
      %v959 = vmul.f32 %v922, 1.442695
      %v960 = vpow.pop %v959
      %v961 = vmul.f32 %v923, 1.442695
      %v962 = vpow.pop %v961
      %v963 = vmul.f32 %v924, 1.442695
      %v964 = vpow.pop %v963
      %v965 = vmul.f32 %v925, 1.442695
      %v966 = vpow.pop %v965
      %v967 = vmul.f32 %v926, 1.442695
      %v968 = vpow.pop %v967
      %v969 = vmul.f32 %v927, 1.442695
      %v970 = vpow.pop %v969
      %v971 = vmul.f32 %v928, 1.442695
      %v972 = vpow.pop %v971
      %v973 = vmul.f32 %v929, 1.442695
      %v974 = vpow.pop %v973
      %v975 = vmul.f32 %v930, 1.442695
      %v976 = vpow.pop %v975
      %v977 = vmul.f32 %v931, 1.442695
      %v978 = vpow.pop %v977
      %v979 = vmul.f32 %v932, 1.442695
      %v980 = vpow.pop %v979
      %v981 = vmul.f32 %v933, 1.442695
      %v982 = vpow.pop %v981
      %v983 = vmul.f32 %v934, 1.442695
      %v984 = vpow.pop %v983
      %v985 = vmul.f32 %v935, 1.442695
      %v986 = vpow.pop %v985
      %v987 = vmul.f32 %v936, 1.442695
      %v988 = vpow.pop %v987
      %v989 = vmul.f32 %v937, 1.442695
      %v990 = vpow.pop %v989
      %v991 = vmul.f32 %v938, 1.442695
      %v992 = vpow.pop %v991
      %v993 = vmul.f32 %v939, 1.442695
      %v994 = vpow.pop %v993
      %v995 = vmul.f32 %v940, 1.442695
      %v996 = vpow.pop %v995
      %v997 = vmul.f32 %v941, 1.442695
      %v998 = vpow.pop %v997
      %v999 = vmul.f32 %v942, 1.442695
      %v1000 = vpow.pop %v999
      %v1001 = vmul.f32 %v943, 1.442695
      %v1002 = vpow.pop %v1001
      %v1003 = vmul.f32 %v944, 1.442695
      %v1004 = vpow.pop %v1003
      %v1005 = vmul.f32 %v945, 1.442695
      %v1006 = vpow.pop %v1005
      %v1007 = vmul.f32 %v946, 1.442695
      %v1008 = vpow.pop %v1007
      %v1009 = vmul.f32 %v947, 1.442695
      %v1010 = vpow.pop %v1009
      %v1011 = vmul.f32 %v948, 1.442695
      %v1012 = vpow.pop %v1011
      %v1013 = vadd.f32 %v950, 1.0
      %v1014 = vadd.f32 %v952, 1.0
      %v1015 = vadd.f32 %v954, 1.0
      %v1016 = vadd.f32 %v956, 1.0
      %v1017 = vadd.f32 %v958, 1.0
      %v1018 = vadd.f32 %v960, 1.0
      %v1019 = vadd.f32 %v962, 1.0
      %v1020 = vadd.f32 %v964, 1.0
      %v1021 = vadd.f32 %v966, 1.0
      %v1022 = vadd.f32 %v968, 1.0
      %v1023 = vadd.f32 %v970, 1.0
      %v1024 = vadd.f32 %v972, 1.0
      %v1025 = vadd.f32 %v974, 1.0
      %v1026 = vadd.f32 %v976, 1.0
      %v1027 = vadd.f32 %v978, 1.0
      %v1028 = vadd.f32 %v980, 1.0
      %v1029 = vadd.f32 %v982, 1.0
      %v1030 = vadd.f32 %v984, 1.0
      %v1031 = vadd.f32 %v986, 1.0
      %v1032 = vadd.f32 %v988, 1.0
      %v1033 = vadd.f32 %v990, 1.0
      %v1034 = vadd.f32 %v992, 1.0
      %v1035 = vadd.f32 %v994, 1.0
      %v1036 = vadd.f32 %v996, 1.0
      %v1037 = vadd.f32 %v998, 1.0
      %v1038 = vadd.f32 %v1000, 1.0
      %v1039 = vadd.f32 %v1002, 1.0
      %v1040 = vadd.f32 %v1004, 1.0
      %v1041 = vadd.f32 %v1006, 1.0
      %v1042 = vadd.f32 %v1008, 1.0
      %v1043 = vadd.f32 %v1010, 1.0
      %v1044 = vadd.f32 %v1012, 1.0
      %v1045 = vrcp.pop %v1013
      %v1046 = vmul.f32 1.0, %v1045
      %v1047 = vrcp.pop %v1014
      %v1048 = vmul.f32 1.0, %v1047
      %v1049 = vrcp.pop %v1015
      %v1050 = vmul.f32 1.0, %v1049
      %v1051 = vrcp.pop %v1016
      %v1052 = vmul.f32 1.0, %v1051
      %v1053 = vrcp.pop %v1017
      %v1054 = vmul.f32 1.0, %v1053
      %v1055 = vrcp.pop %v1018
      %v1056 = vmul.f32 1.0, %v1055
      %v1057 = vrcp.pop %v1019
      %v1058 = vmul.f32 1.0, %v1057
      %v1059 = vrcp.pop %v1020
      %v1060 = vmul.f32 1.0, %v1059
      %v1061 = vrcp.pop %v1021
      %v1062 = vmul.f32 1.0, %v1061
      %v1063 = vrcp.pop %v1022
      %v1064 = vmul.f32 1.0, %v1063
      %v1065 = vrcp.pop %v1023
      %v1066 = vmul.f32 1.0, %v1065
      %v1067 = vrcp.pop %v1024
      %v1068 = vmul.f32 1.0, %v1067
      %v1069 = vrcp.pop %v1025
      %v1070 = vmul.f32 1.0, %v1069
      %v1071 = vrcp.pop %v1026
      %v1072 = vmul.f32 1.0, %v1071
      %v1073 = vrcp.pop %v1027
      %v1074 = vmul.f32 1.0, %v1073
      %v1075 = vrcp.pop %v1028
      %v1076 = vmul.f32 1.0, %v1075
      %v1077 = vrcp.pop %v1029
      %v1078 = vmul.f32 1.0, %v1077
      %v1079 = vrcp.pop %v1030
      %v1080 = vmul.f32 1.0, %v1079
      %v1081 = vrcp.pop %v1031
      %v1082 = vmul.f32 1.0, %v1081
      %v1083 = vrcp.pop %v1032
      %v1084 = vmul.f32 1.0, %v1083
      %v1085 = vrcp.pop %v1033
      %v1086 = vmul.f32 1.0, %v1085
      %v1087 = vrcp.pop %v1034
      %v1088 = vmul.f32 1.0, %v1087
      %v1089 = vrcp.pop %v1035
      %v1090 = vmul.f32 1.0, %v1089
      %v1091 = vrcp.pop %v1036
      %v1092 = vmul.f32 1.0, %v1091
      %v1093 = vrcp.pop %v1037
      %v1094 = vmul.f32 1.0, %v1093
      %v1095 = vrcp.pop %v1038
      %v1096 = vmul.f32 1.0, %v1095
      %v1097 = vrcp.pop %v1039
      %v1098 = vmul.f32 1.0, %v1097
      %v1099 = vrcp.pop %v1040
      %v1100 = vmul.f32 1.0, %v1099
      %v1101 = vrcp.pop %v1041
      %v1102 = vmul.f32 1.0, %v1101
      %v1103 = vrcp.pop %v1042
      %v1104 = vmul.f32 1.0, %v1103
      %v1105 = vrcp.pop %v1043
      %v1106 = vmul.f32 1.0, %v1105
      %v1107 = vrcp.pop %v1044
      %v1108 = vmul.f32 1.0, %v1107
      %1141 = vrot.lane.b32.xlu0 %v1046, 104
      %v1142 = vpop.permute.xlu0 %1141
      %1143 = vrot.lane.b32.xlu0 %v1048, 104
      %v1144 = vpop.permute.xlu0 %1143
      %1145 = vrot.lane.b32.xlu0 %v1050, 104
      %v1146 = vpop.permute.xlu0 %1145
      %1147 = vrot.lane.b32.xlu0 %v1052, 104
      %v1148 = vpop.permute.xlu0 %1147
      %1149 = vrot.lane.b32.xlu0 %v1054, 104
      %v1150 = vpop.permute.xlu0 %1149
      %1151 = vrot.lane.b32.xlu0 %v1056, 104
      %v1152 = vpop.permute.xlu0 %1151
      %1153 = vrot.lane.b32.xlu0 %v1058, 104
      %v1154 = vpop.permute.xlu0 %1153
      %1155 = vrot.lane.b32.xlu0 %v1060, 104
      %v1156 = vpop.permute.xlu0 %1155
      %1157 = vrot.lane.b32.xlu0 %v1062, 104
      %v1158 = vpop.permute.xlu0 %1157
      %1159 = vrot.lane.b32.xlu0 %v1064, 104
      %v1160 = vpop.permute.xlu0 %1159
      %1161 = vrot.lane.b32.xlu0 %v1066, 104
      %v1162 = vpop.permute.xlu0 %1161
      %1163 = vrot.lane.b32.xlu0 %v1068, 104
      %v1164 = vpop.permute.xlu0 %1163
      %1165 = vrot.lane.b32.xlu0 %v1070, 104
      %v1166 = vpop.permute.xlu0 %1165
      %1167 = vrot.lane.b32.xlu0 %v1072, 104
      %v1168 = vpop.permute.xlu0 %1167
      %1169 = vrot.lane.b32.xlu0 %v1074, 104
      %v1170 = vpop.permute.xlu0 %1169
      %1171 = vrot.lane.b32.xlu0 %v1076, 104
      %v1172 = vpop.permute.xlu0 %1171
      %1173 = vrot.lane.b32.xlu0 %v1078, 104
      %v1174 = vpop.permute.xlu0 %1173
      %1175 = vrot.lane.b32.xlu0 %v1080, 104
      %v1176 = vpop.permute.xlu0 %1175
      %1177 = vrot.lane.b32.xlu0 %v1082, 104
      %v1178 = vpop.permute.xlu0 %1177
      %1179 = vrot.lane.b32.xlu0 %v1084, 104
      %v1180 = vpop.permute.xlu0 %1179
      %1181 = vrot.lane.b32.xlu0 %v1086, 104
      %v1182 = vpop.permute.xlu0 %1181
      %1183 = vrot.lane.b32.xlu0 %v1088, 104
      %v1184 = vpop.permute.xlu0 %1183
      %1185 = vrot.lane.b32.xlu0 %v1090, 104
      %v1186 = vpop.permute.xlu0 %1185
      %1187 = vrot.lane.b32.xlu0 %v1092, 104
      %v1188 = vpop.permute.xlu0 %1187
      %1189 = vrot.lane.b32.xlu0 %v1094, 104
      %v1190 = vpop.permute.xlu0 %1189
      %1191 = vrot.lane.b32.xlu0 %v1096, 104
      %v1192 = vpop.permute.xlu0 %1191
      %1193 = vrot.lane.b32.xlu0 %v1098, 104
      %v1194 = vpop.permute.xlu0 %1193
      %1195 = vrot.lane.b32.xlu0 %v1100, 104
      %v1196 = vpop.permute.xlu0 %1195
      %1197 = vrot.lane.b32.xlu0 %v1102, 104
      %v1198 = vpop.permute.xlu0 %1197
      %1199 = vrot.lane.b32.xlu0 %v1104, 104
      %v1200 = vpop.permute.xlu0 %1199
      %1201 = vrot.lane.b32.xlu0 %v1106, 104
      %v1202 = vpop.permute.xlu0 %1201
      %1203 = vrot.lane.b32.xlu0 %v1108, 104
      %v1204 = vpop.permute.xlu0 %1203
      %v1237 = vmul.f32 %v885, %v1142
      %v1238 = vmul.f32 %v886, %v1144
      %v1239 = vmul.f32 %v887, %v1146
      %v1240 = vmul.f32 %v888, %v1148
      %v1241 = vmul.f32 %v889, %v1150
      %v1242 = vmul.f32 %v890, %v1152
      %v1243 = vmul.f32 %v891, %v1154
      %v1244 = vmul.f32 %v892, %v1156
      %v1245 = vmul.f32 %v893, %v1158
      %v1246 = vmul.f32 %v894, %v1160
      %v1247 = vmul.f32 %v895, %v1162
      %v1248 = vmul.f32 %v896, %v1164
      %v1249 = vmul.f32 %v897, %v1166
      %v1250 = vmul.f32 %v898, %v1168
      %v1251 = vmul.f32 %v899, %v1170
      %v1252 = vmul.f32 %v900, %v1172
      %v1253 = vmul.f32 %v901, %v1174
      %v1254 = vmul.f32 %v902, %v1176
      %v1255 = vmul.f32 %v903, %v1178
      %v1256 = vmul.f32 %v904, %v1180
      %v1257 = vmul.f32 %v905, %v1182
      %v1258 = vmul.f32 %v906, %v1184
      %v1259 = vmul.f32 %v907, %v1186
      %v1260 = vmul.f32 %v908, %v1188
      %v1261 = vmul.f32 %v909, %v1190
      %v1262 = vmul.f32 %v910, %v1192
      %v1263 = vmul.f32 %v911, %v1194
      %v1264 = vmul.f32 %v912, %v1196
      %v1265 = vmul.f32 %v913, %v1198
      %v1266 = vmul.f32 %v914, %v1200
      %v1267 = vmul.f32 %v915, %v1202
      %v1268 = vmul.f32 %v916, %v1204
      %s1269 = scalar_lea.vmem %s1, 24
      %v1270 = vld [vmem:[%s1269] sm:$0xff]
      %v1271 = vld [vmem:[%s1269 + $0x8] sm:$0xff]
      %v1272 = vld [vmem:[%s1269 + $0x10] sm:$0xff]
      %v1274 = vsel %vm263, %v1237, 0
      %v1277 = vsel %vm263, %v1238, 0
      %v1280 = vsel %vm263, %v1239, 0
      %v1283 = vsel %vm263, %v1240, 0
      %v1286 = vsel %vm263, %v1241, 0
      %v1289 = vsel %vm263, %v1242, 0
      %v1292 = vsel %vm263, %v1243, 0
      %v1295 = vsel %vm263, %v1244, 0
      %v1298 = vsel %vm263, %v1245, 0
      %v1301 = vsel %vm263, %v1246, 0
      %v1304 = vsel %vm263, %v1247, 0
      %v1307 = vsel %vm263, %v1248, 0
      %v1310 = vsel %vm263, %v1249, 0
      %v1313 = vsel %vm263, %v1250, 0
      %v1316 = vsel %vm263, %v1251, 0
      %v1319 = vsel %vm263, %v1252, 0
      %v1322 = vsel %vm263, %v1253, 0
      %v1325 = vsel %vm263, %v1254, 0
      %v1328 = vsel %vm263, %v1255, 0
      %v1331 = vsel %vm263, %v1256, 0
      %v1334 = vsel %vm263, %v1257, 0
      %v1337 = vsel %vm263, %v1258, 0
      %v1340 = vsel %vm263, %v1259, 0
      %v1343 = vsel %vm263, %v1260, 0
      %v1346 = vsel %vm263, %v1261, 0
      %v1349 = vsel %vm263, %v1262, 0
      %v1352 = vsel %vm263, %v1263, 0
      %v1355 = vsel %vm263, %v1264, 0
      %v1358 = vsel %vm263, %v1265, 0
      %v1361 = vsel %vm263, %v1266, 0
      %v1364 = vsel %vm263, %v1267, 0
      %v1367 = vsel %vm263, %v1268, 0
      %1369 = vmatprep.subr.mxu0 0.0
      %1370 = vmatpush1.msra.mxu0 %v1270
      %1371 = vmatprep.subr.mxu0 0.0
      %1372 = vmatpush1.msra.mxu0 %v1271
      %1373 = vmatprep.subr.mxu0 0.0
      %1374 = vmatpush1.msra.mxu0 %v1272
      %1375 = vmatprep.subr.mxu0 0.0
      %1376 = vmatpush1.msra.mxu0 0.0
      %1377 = vmatprep.subr.mxu0 0.0
      %1378 = vmatpush1.msra.mxu0 0.0
      %1379 = vmatprep.subr.mxu0 0.0
      %1380 = vmatpush1.msra.mxu0 0.0
      %1381 = vmatprep.subr.mxu0 0.0
      %1382 = vmatpush1.msra.mxu0 0.0
      %1383 = vmatprep.subr.mxu0 0.0
      %1384 = vmatpush1.msra.mxu0 0.0
      %1385 = vmatprep.subr.mxu0 0.0
      %1386 = vmatpush1.msra.mxu0 0.0
      %1387 = vmatprep.subr.mxu0 0.0
      %1388 = vmatpush1.msra.mxu0 0.0
      %1389 = vmatprep.subr.mxu0 0.0
      %1390 = vmatpush1.msra.mxu0 0.0
      %1391 = vmatprep.subr.mxu0 0.0
      %1392 = vmatpush1.msra.mxu0 0.0
      %1393 = vmatprep.subr.mxu0 0.0
      %1394 = vmatpush1.msra.mxu0 0.0
      %1395 = vmatprep.subr.mxu0 0.0
      %1396 = vmatpush1.msra.mxu0 0.0
      %1397 = vmatprep.subr.mxu0 0.0
      %1398 = vmatpush1.msra.mxu0 0.0
      %1399 = vmatprep.subr.mxu0 0.0
      %1400 = vmatpush1.msra.mxu0 0.0
      %1401 = vmatprep.subr.mxu0 0.0
      %1402 = vmatpush1.msra.mxu0 0.0
      %1403 = vmatprep.subr.mxu0 0.0
      %1404 = vmatpush1.msra.mxu0 0.0
      %1405 = vmatprep.subr.mxu0 0.0
      %1406 = vmatpush1.msra.mxu0 0.0
      %1407 = vmatprep.subr.mxu0 0.0
      %1408 = vmatpush1.msra.mxu0 0.0
      %1409 = vmatprep.subr.mxu0 0.0
      %1410 = vmatpush1.msra.mxu0 0.0
      %1411 = vmatprep.subr.mxu0 0.0
      %1412 = vmatpush1.msra.mxu0 0.0
      %1413 = vmatprep.subr.mxu0 0.0
      %1414 = vmatpush1.msra.mxu0 0.0
      %1415 = vmatprep.subr.mxu0 0.0
      %1416 = vmatpush1.msra.mxu0 0.0
      %1417 = vmatprep.subr.mxu0 0.0
      %1418 = vmatpush1.msra.mxu0 0.0
      %1419 = vmatprep.subr.mxu0 0.0
      %1420 = vmatpush1.msra.mxu0 0.0
      %1421 = vmatprep.subr.mxu0 0.0
      %1422 = vmatpush1.msra.mxu0 0.0
      %1423 = vmatprep.subr.mxu0 0.0
      %1424 = vmatpush1.msra.mxu0 0.0
      %1425 = vmatprep.subr.mxu0 0.0
      %1426 = vmatpush1.msra.mxu0 0.0
      %1427 = vmatprep.subr.mxu0 0.0
      %1428 = vmatpush1.msra.mxu0 0.0
      %1429 = vmatprep.subr.mxu0 0.0
      %1430 = vmatpush1.msra.mxu0 0.0
      %1431 = vmatprep.subr.mxu0 0.0
      %1432 = vmatpush1.msra.mxu0 0.0
      %1433 = vmatprep.mubr.f32.mxu0 0.0
      %1434 = vmatmul.mubr.f32.gmra.mrb[0].mxu0 %v1274
      %v1435 = vpop.f32.mrb[0].mxu0
      %v1436 = vadd.f32 0.0, %v1435
      %v1437 = vpop.f32.mrb[0].mxu0
      %1438 = vmatprep.mubr.f32.mxu0 0.0
      %1439 = vmatmul.mubr.f32.gmra.mrb[0].mxu0 %v1277
      %v1440 = vpop.f32.mrb[0].mxu0
      %v1441 = vadd.f32 0.0, %v1440
      %v1442 = vpop.f32.mrb[0].mxu0
      %1443 = vmatprep.mubr.f32.mxu0 0.0
      %1444 = vmatmul.mubr.f32.gmra.mrb[0].mxu0 %v1280
      %v1445 = vpop.f32.mrb[0].mxu0
      %v1446 = vadd.f32 0.0, %v1445
      %v1447 = vpop.f32.mrb[0].mxu0
      %1448 = vmatprep.mubr.f32.mxu0 0.0
      %1449 = vmatmul.mubr.f32.gmra.mrb[0].mxu0 %v1283
      %v1450 = vpop.f32.mrb[0].mxu0
      %v1451 = vadd.f32 0.0, %v1450
      %v1452 = vpop.f32.mrb[0].mxu0
      %1453 = vmatprep.mubr.f32.mxu0 0.0
      %1454 = vmatmul.mubr.f32.gmra.mrb[0].mxu0 %v1286
      %v1455 = vpop.f32.mrb[0].mxu0
      %v1456 = vadd.f32 0.0, %v1455
      %v1457 = vpop.f32.mrb[0].mxu0
      %1458 = vmatprep.mubr.f32.mxu0 0.0
      %1459 = vmatmul.mubr.f32.gmra.mrb[0].mxu0 %v1289
      %v1460 = vpop.f32.mrb[0].mxu0
      %v1461 = vadd.f32 0.0, %v1460
      %v1462 = vpop.f32.mrb[0].mxu0
      %1463 = vmatprep.mubr.f32.mxu0 0.0
      %1464 = vmatmul.mubr.f32.gmra.mrb[0].mxu0 %v1292
      %v1465 = vpop.f32.mrb[0].mxu0
      %v1466 = vadd.f32 0.0, %v1465
      %v1467 = vpop.f32.mrb[0].mxu0
      %1468 = vmatprep.mubr.f32.mxu0 0.0
      %1469 = vmatmul.mubr.f32.gmra.mrb[0].mxu0 %v1295
      %v1470 = vpop.f32.mrb[0].mxu0
      %v1471 = vadd.f32 0.0, %v1470
      %v1472 = vpop.f32.mrb[0].mxu0
      %1473 = vmatprep.mubr.f32.mxu0 0.0
      %1474 = vmatmul.mubr.f32.gmra.mrb[0].mxu0 %v1298
      %v1475 = vpop.f32.mrb[0].mxu0
      %v1476 = vadd.f32 0.0, %v1475
      %v1477 = vpop.f32.mrb[0].mxu0
      %1478 = vmatprep.mubr.f32.mxu0 0.0
      %1479 = vmatmul.mubr.f32.gmra.mrb[0].mxu0 %v1301
      %v1480 = vpop.f32.mrb[0].mxu0
      %v1481 = vadd.f32 0.0, %v1480
      %v1482 = vpop.f32.mrb[0].mxu0
      %1483 = vmatprep.mubr.f32.mxu0 0.0
      %1484 = vmatmul.mubr.f32.gmra.mrb[0].mxu0 %v1304
      %v1485 = vpop.f32.mrb[0].mxu0
      %v1486 = vadd.f32 0.0, %v1485
      %v1487 = vpop.f32.mrb[0].mxu0
      %1488 = vmatprep.mubr.f32.mxu0 0.0
      %1489 = vmatmul.mubr.f32.gmra.mrb[0].mxu0 %v1307
      %v1490 = vpop.f32.mrb[0].mxu0
      %v1491 = vadd.f32 0.0, %v1490
      %v1492 = vpop.f32.mrb[0].mxu0
      %1493 = vmatprep.mubr.f32.mxu0 0.0
      %1494 = vmatmul.mubr.f32.gmra.mrb[0].mxu0 %v1310
      %v1495 = vpop.f32.mrb[0].mxu0
      %v1496 = vadd.f32 0.0, %v1495
      %v1497 = vpop.f32.mrb[0].mxu0
      %1498 = vmatprep.mubr.f32.mxu0 0.0
      %1499 = vmatmul.mubr.f32.gmra.mrb[0].mxu0 %v1313
      %v1500 = vpop.f32.mrb[0].mxu0
      %v1501 = vadd.f32 0.0, %v1500
      %v1502 = vpop.f32.mrb[0].mxu0
      %1503 = vmatprep.mubr.f32.mxu0 0.0
      %1504 = vmatmul.mubr.f32.gmra.mrb[0].mxu0 %v1316
      %v1505 = vpop.f32.mrb[0].mxu0
      %v1506 = vadd.f32 0.0, %v1505
      %v1507 = vpop.f32.mrb[0].mxu0
      %1508 = vmatprep.mubr.f32.mxu0 0.0
      %1509 = vmatmul.mubr.f32.gmra.mrb[0].mxu0 %v1319
      %v1510 = vpop.f32.mrb[0].mxu0
      %v1511 = vadd.f32 0.0, %v1510
      %v1512 = vpop.f32.mrb[0].mxu0
      %1513 = vmatprep.mubr.f32.mxu0 0.0
      %1514 = vmatmul.mubr.f32.gmra.mrb[0].mxu0 %v1322
      %v1515 = vpop.f32.mrb[0].mxu0
      %v1516 = vadd.f32 0.0, %v1515
      %v1517 = vpop.f32.mrb[0].mxu0
      %1518 = vmatprep.mubr.f32.mxu0 0.0
      %1519 = vmatmul.mubr.f32.gmra.mrb[0].mxu0 %v1325
      %v1520 = vpop.f32.mrb[0].mxu0
      %v1521 = vadd.f32 0.0, %v1520
      %v1522 = vpop.f32.mrb[0].mxu0
      %1523 = vmatprep.mubr.f32.mxu0 0.0
      %1524 = vmatmul.mubr.f32.gmra.mrb[0].mxu0 %v1328
      %v1525 = vpop.f32.mrb[0].mxu0
      %v1526 = vadd.f32 0.0, %v1525
      %v1527 = vpop.f32.mrb[0].mxu0
      %1528 = vmatprep.mubr.f32.mxu0 0.0
      %1529 = vmatmul.mubr.f32.gmra.mrb[0].mxu0 %v1331
      %v1530 = vpop.f32.mrb[0].mxu0
      %v1531 = vadd.f32 0.0, %v1530
      %v1532 = vpop.f32.mrb[0].mxu0
      %1533 = vmatprep.mubr.f32.mxu0 0.0
      %1534 = vmatmul.mubr.f32.gmra.mrb[0].mxu0 %v1334
      %v1535 = vpop.f32.mrb[0].mxu0
      %v1536 = vadd.f32 0.0, %v1535
      %v1537 = vpop.f32.mrb[0].mxu0
      %1538 = vmatprep.mubr.f32.mxu0 0.0
      %1539 = vmatmul.mubr.f32.gmra.mrb[0].mxu0 %v1337
      %v1540 = vpop.f32.mrb[0].mxu0
      %v1541 = vadd.f32 0.0, %v1540
      %v1542 = vpop.f32.mrb[0].mxu0
      %1543 = vmatprep.mubr.f32.mxu0 0.0
      %1544 = vmatmul.mubr.f32.gmra.mrb[0].mxu0 %v1340
      %v1545 = vpop.f32.mrb[0].mxu0
      %v1546 = vadd.f32 0.0, %v1545
      %v1547 = vpop.f32.mrb[0].mxu0
      %1548 = vmatprep.mubr.f32.mxu0 0.0
      %1549 = vmatmul.mubr.f32.gmra.mrb[0].mxu0 %v1343
      %v1550 = vpop.f32.mrb[0].mxu0
      %v1551 = vadd.f32 0.0, %v1550
      %v1552 = vpop.f32.mrb[0].mxu0
      %1553 = vmatprep.mubr.f32.mxu0 0.0
      %1554 = vmatmul.mubr.f32.gmra.mrb[0].mxu0 %v1346
      %v1555 = vpop.f32.mrb[0].mxu0
      %v1556 = vadd.f32 0.0, %v1555
      %v1557 = vpop.f32.mrb[0].mxu0
      %1558 = vmatprep.mubr.f32.mxu0 0.0
      %1559 = vmatmul.mubr.f32.gmra.mrb[0].mxu0 %v1349
      %v1560 = vpop.f32.mrb[0].mxu0
      %v1561 = vadd.f32 0.0, %v1560
      %v1562 = vpop.f32.mrb[0].mxu0
      %1563 = vmatprep.mubr.f32.mxu0 0.0
      %1564 = vmatmul.mubr.f32.gmra.mrb[0].mxu0 %v1352
      %v1565 = vpop.f32.mrb[0].mxu0
      %v1566 = vadd.f32 0.0, %v1565
      %v1567 = vpop.f32.mrb[0].mxu0
      %1568 = vmatprep.mubr.f32.mxu0 0.0
      %1569 = vmatmul.mubr.f32.gmra.mrb[0].mxu0 %v1355
      %v1570 = vpop.f32.mrb[0].mxu0
      %v1571 = vadd.f32 0.0, %v1570
      %v1572 = vpop.f32.mrb[0].mxu0
      %1573 = vmatprep.mubr.f32.mxu0 0.0
      %1574 = vmatmul.mubr.f32.gmra.mrb[0].mxu0 %v1358
      %v1575 = vpop.f32.mrb[0].mxu0
      %v1576 = vadd.f32 0.0, %v1575
      %v1577 = vpop.f32.mrb[0].mxu0
      %1578 = vmatprep.mubr.f32.mxu0 0.0
      %1579 = vmatmul.mubr.f32.gmra.mrb[0].mxu0 %v1361
      %v1580 = vpop.f32.mrb[0].mxu0
      %v1581 = vadd.f32 0.0, %v1580
      %v1582 = vpop.f32.mrb[0].mxu0
      %1583 = vmatprep.mubr.f32.mxu0 0.0
      %1584 = vmatmul.mubr.f32.gmra.mrb[0].mxu0 %v1364
      %v1585 = vpop.f32.mrb[0].mxu0
      %v1586 = vadd.f32 0.0, %v1585
      %v1587 = vpop.f32.mrb[0].mxu0
      %1588 = vmatprep.mubr.f32.mxu0 0.0
      %1589 = vmatmul.mubr.f32.gmra.mrb[0].mxu0 %v1367
      %v1590 = vpop.f32.mrb[0].mxu0
      %v1591 = vadd.f32 0.0, %v1590
      %v1592 = vpop.f32.mrb[0].mxu0
      %1593 = vdwg.mxu0
      %v1594 = vsel %vm585, %v1436, 0.0
      %v1595 = vsel %vm585, %v1441, 0.0
      %v1596 = vadd.f32 %v1594, %v1595
      %v1597 = vsel %vm585, %v1446, 0.0
      %v1598 = vadd.f32 %v1596, %v1597
      %v1599 = vsel %vm585, %v1451, 0.0
      %v1600 = vadd.f32 %v1598, %v1599
      %v1601 = vsel %vm585, %v1456, 0.0
      %v1602 = vadd.f32 %v1600, %v1601
      %v1603 = vsel %vm585, %v1461, 0.0
      %v1604 = vadd.f32 %v1602, %v1603
      %v1605 = vsel %vm585, %v1466, 0.0
      %v1606 = vadd.f32 %v1604, %v1605
      %v1607 = vsel %vm585, %v1471, 0.0
      %v1608 = vadd.f32 %v1606, %v1607
      %v1609 = vsel %vm585, %v1476, 0.0
      %v1610 = vadd.f32 %v1608, %v1609
      %v1611 = vsel %vm585, %v1481, 0.0
      %v1612 = vadd.f32 %v1610, %v1611
      %v1613 = vsel %vm585, %v1486, 0.0
      %v1614 = vadd.f32 %v1612, %v1613
      %v1615 = vsel %vm585, %v1491, 0.0
      %v1616 = vadd.f32 %v1614, %v1615
      %v1617 = vsel %vm585, %v1496, 0.0
      %v1618 = vadd.f32 %v1616, %v1617
      %v1619 = vsel %vm585, %v1501, 0.0
      %v1620 = vadd.f32 %v1618, %v1619
      %v1621 = vsel %vm585, %v1506, 0.0
      %v1622 = vadd.f32 %v1620, %v1621
      %v1623 = vsel %vm585, %v1511, 0.0
      %v1624 = vadd.f32 %v1622, %v1623
      %v1625 = vrot.slane %v1624, 4
      %v1626 = vadd.f32 %v1624, %v1625
      %v1627 = vrot.slane %v1626, 2
      %v1628 = vadd.f32 %v1626, %v1627
      %v1629 = vrot.slane %v1628, 1
      %v1630 = vadd.f32 %v1628, %v1629
      %v1631 = vmul.f32 %v1630, %v623
      %v1632 = vsub.f32 %v1436, %v1631
      %v1633 = vsub.f32 %v1441, %v1631
      %v1634 = vsub.f32 %v1446, %v1631
      %v1635 = vsub.f32 %v1451, %v1631
      %v1636 = vsub.f32 %v1456, %v1631
      %v1637 = vsub.f32 %v1461, %v1631
      %v1638 = vsub.f32 %v1466, %v1631
      %v1639 = vsub.f32 %v1471, %v1631
      %v1640 = vsub.f32 %v1476, %v1631
      %v1641 = vsub.f32 %v1481, %v1631
      %v1642 = vsub.f32 %v1486, %v1631
      %v1643 = vsub.f32 %v1491, %v1631
      %v1644 = vsub.f32 %v1496, %v1631
      %v1645 = vsub.f32 %v1501, %v1631
      %v1646 = vsub.f32 %v1506, %v1631
      %v1647 = vsub.f32 %v1511, %v1631
      %v1648 = vmul.f32 %v1632, %v1632
      %v1649 = vmul.f32 %v1633, %v1633
      %v1650 = vmul.f32 %v1634, %v1634
      %v1651 = vmul.f32 %v1635, %v1635
      %v1652 = vmul.f32 %v1636, %v1636
      %v1653 = vmul.f32 %v1637, %v1637
      %v1654 = vmul.f32 %v1638, %v1638
      %v1655 = vmul.f32 %v1639, %v1639
      %v1656 = vmul.f32 %v1640, %v1640
      %v1657 = vmul.f32 %v1641, %v1641
      %v1658 = vmul.f32 %v1642, %v1642
      %v1659 = vmul.f32 %v1643, %v1643
      %v1660 = vmul.f32 %v1644, %v1644
      %v1661 = vmul.f32 %v1645, %v1645
      %v1662 = vmul.f32 %v1646, %v1646
      %v1663 = vmul.f32 %v1647, %v1647
      %v1664 = vsel %vm585, %v1648, 0.0
      %v1665 = vsel %vm585, %v1649, 0.0
      %v1666 = vadd.f32 %v1664, %v1665
      %v1667 = vsel %vm585, %v1650, 0.0
      %v1668 = vadd.f32 %v1666, %v1667
      %v1669 = vsel %vm585, %v1651, 0.0
      %v1670 = vadd.f32 %v1668, %v1669
      %v1671 = vsel %vm585, %v1652, 0.0
      %v1672 = vadd.f32 %v1670, %v1671
      %v1673 = vsel %vm585, %v1653, 0.0
      %v1674 = vadd.f32 %v1672, %v1673
      %v1675 = vsel %vm585, %v1654, 0.0
      %v1676 = vadd.f32 %v1674, %v1675
      %v1677 = vsel %vm585, %v1655, 0.0
      %v1678 = vadd.f32 %v1676, %v1677
      %v1679 = vsel %vm585, %v1656, 0.0
      %v1680 = vadd.f32 %v1678, %v1679
      %v1681 = vsel %vm585, %v1657, 0.0
      %v1682 = vadd.f32 %v1680, %v1681
      %v1683 = vsel %vm585, %v1658, 0.0
      %v1684 = vadd.f32 %v1682, %v1683
      %v1685 = vsel %vm585, %v1659, 0.0
      %v1686 = vadd.f32 %v1684, %v1685
      %v1687 = vsel %vm585, %v1660, 0.0
      %v1688 = vadd.f32 %v1686, %v1687
      %v1689 = vsel %vm585, %v1661, 0.0
      %v1690 = vadd.f32 %v1688, %v1689
      %v1691 = vsel %vm585, %v1662, 0.0
      %v1692 = vadd.f32 %v1690, %v1691
      %v1693 = vsel %vm585, %v1663, 0.0
      %v1694 = vadd.f32 %v1692, %v1693
      %v1695 = vrot.slane %v1694, 4
      %v1696 = vadd.f32 %v1694, %v1695
      %v1697 = vrot.slane %v1696, 2
      %v1698 = vadd.f32 %v1696, %v1697
      %v1699 = vrot.slane %v1698, 1
      %v1700 = vadd.f32 %v1698, %v1699
      %v1701 = vmul.f32 %v1700, %v623
      %v1702 = vadd.f32 %v1701, 1e-05
      %v1703 = vrsqrt.pop %v1702
      %v1704 = vmul.f32 %v1632, %v1703
      %v1705 = vmul.f32 %v1633, %v1703
      %v1706 = vmul.f32 %v1634, %v1703
      %v1707 = vmul.f32 %v1635, %v1703
      %v1708 = vmul.f32 %v1636, %v1703
      %v1709 = vmul.f32 %v1637, %v1703
      %v1710 = vmul.f32 %v1638, %v1703
      %v1711 = vmul.f32 %v1639, %v1703
      %v1712 = vmul.f32 %v1640, %v1703
      %v1713 = vmul.f32 %v1641, %v1703
      %v1714 = vmul.f32 %v1642, %v1703
      %v1715 = vmul.f32 %v1643, %v1703
      %v1716 = vmul.f32 %v1644, %v1703
      %v1717 = vmul.f32 %v1645, %v1703
      %v1718 = vmul.f32 %v1646, %v1703
      %v1719 = vmul.f32 %v1647, %v1703
      %v1720 = vsel %vm585, %v1516, 0.0
      %v1721 = vsel %vm585, %v1521, 0.0
      %v1722 = vadd.f32 %v1720, %v1721
      %v1723 = vsel %vm585, %v1526, 0.0
      %v1724 = vadd.f32 %v1722, %v1723
      %v1725 = vsel %vm585, %v1531, 0.0
      %v1726 = vadd.f32 %v1724, %v1725
      %v1727 = vsel %vm585, %v1536, 0.0
      %v1728 = vadd.f32 %v1726, %v1727
      %v1729 = vsel %vm585, %v1541, 0.0
      %v1730 = vadd.f32 %v1728, %v1729
      %v1731 = vsel %vm585, %v1546, 0.0
      %v1732 = vadd.f32 %v1730, %v1731
      %v1733 = vsel %vm585, %v1551, 0.0
      %v1734 = vadd.f32 %v1732, %v1733
      %v1735 = vsel %vm585, %v1556, 0.0
      %v1736 = vadd.f32 %v1734, %v1735
      %v1737 = vsel %vm585, %v1561, 0.0
      %v1738 = vadd.f32 %v1736, %v1737
      %v1739 = vsel %vm585, %v1566, 0.0
      %v1740 = vadd.f32 %v1738, %v1739
      %v1741 = vsel %vm585, %v1571, 0.0
      %v1742 = vadd.f32 %v1740, %v1741
      %v1743 = vsel %vm585, %v1576, 0.0
      %v1744 = vadd.f32 %v1742, %v1743
      %v1745 = vsel %vm585, %v1581, 0.0
      %v1746 = vadd.f32 %v1744, %v1745
      %v1747 = vsel %vm585, %v1586, 0.0
      %v1748 = vadd.f32 %v1746, %v1747
      %v1749 = vsel %vm585, %v1591, 0.0
      %v1750 = vadd.f32 %v1748, %v1749
      %v1751 = vrot.slane %v1750, 4
      %v1752 = vadd.f32 %v1750, %v1751
      %v1753 = vrot.slane %v1752, 2
      %v1754 = vadd.f32 %v1752, %v1753
      %v1755 = vrot.slane %v1754, 1
      %v1756 = vadd.f32 %v1754, %v1755
      %v1757 = vmul.f32 %v1756, %v623
      %v1758 = vsub.f32 %v1516, %v1757
      %v1759 = vsub.f32 %v1521, %v1757
      %v1760 = vsub.f32 %v1526, %v1757
      %v1761 = vsub.f32 %v1531, %v1757
      %v1762 = vsub.f32 %v1536, %v1757
      %v1763 = vsub.f32 %v1541, %v1757
      %v1764 = vsub.f32 %v1546, %v1757
      %v1765 = vsub.f32 %v1551, %v1757
      %v1766 = vsub.f32 %v1556, %v1757
      %v1767 = vsub.f32 %v1561, %v1757
      %v1768 = vsub.f32 %v1566, %v1757
      %v1769 = vsub.f32 %v1571, %v1757
      %v1770 = vsub.f32 %v1576, %v1757
      %v1771 = vsub.f32 %v1581, %v1757
      %v1772 = vsub.f32 %v1586, %v1757
      %v1773 = vsub.f32 %v1591, %v1757
      %v1774 = vmul.f32 %v1758, %v1758
      %v1775 = vmul.f32 %v1759, %v1759
      %v1776 = vmul.f32 %v1760, %v1760
      %v1777 = vmul.f32 %v1761, %v1761
      %v1778 = vmul.f32 %v1762, %v1762
      %v1779 = vmul.f32 %v1763, %v1763
      %v1780 = vmul.f32 %v1764, %v1764
      %v1781 = vmul.f32 %v1765, %v1765
      %v1782 = vmul.f32 %v1766, %v1766
      %v1783 = vmul.f32 %v1767, %v1767
      %v1784 = vmul.f32 %v1768, %v1768
      %v1785 = vmul.f32 %v1769, %v1769
      %v1786 = vmul.f32 %v1770, %v1770
      %v1787 = vmul.f32 %v1771, %v1771
      %v1788 = vmul.f32 %v1772, %v1772
      %v1789 = vmul.f32 %v1773, %v1773
      %v1790 = vsel %vm585, %v1774, 0.0
      %v1791 = vsel %vm585, %v1775, 0.0
      %v1792 = vadd.f32 %v1790, %v1791
      %v1793 = vsel %vm585, %v1776, 0.0
      %v1794 = vadd.f32 %v1792, %v1793
      %v1795 = vsel %vm585, %v1777, 0.0
      %v1796 = vadd.f32 %v1794, %v1795
      %v1797 = vsel %vm585, %v1778, 0.0
      %v1798 = vadd.f32 %v1796, %v1797
      %v1799 = vsel %vm585, %v1779, 0.0
      %v1800 = vadd.f32 %v1798, %v1799
      %v1801 = vsel %vm585, %v1780, 0.0
      %v1802 = vadd.f32 %v1800, %v1801
      %v1803 = vsel %vm585, %v1781, 0.0
      %v1804 = vadd.f32 %v1802, %v1803
      %v1805 = vsel %vm585, %v1782, 0.0
      %v1806 = vadd.f32 %v1804, %v1805
      %v1807 = vsel %vm585, %v1783, 0.0
      %v1808 = vadd.f32 %v1806, %v1807
      %v1809 = vsel %vm585, %v1784, 0.0
      %v1810 = vadd.f32 %v1808, %v1809
      %v1811 = vsel %vm585, %v1785, 0.0
      %v1812 = vadd.f32 %v1810, %v1811
      %v1813 = vsel %vm585, %v1786, 0.0
      %v1814 = vadd.f32 %v1812, %v1813
      %v1815 = vsel %vm585, %v1787, 0.0
      %v1816 = vadd.f32 %v1814, %v1815
      %v1817 = vsel %vm585, %v1788, 0.0
      %v1818 = vadd.f32 %v1816, %v1817
      %v1819 = vsel %vm585, %v1789, 0.0
      %v1820 = vadd.f32 %v1818, %v1819
      %v1821 = vrot.slane %v1820, 4
      %v1822 = vadd.f32 %v1820, %v1821
      %v1823 = vrot.slane %v1822, 2
      %v1824 = vadd.f32 %v1822, %v1823
      %v1825 = vrot.slane %v1824, 1
      %v1826 = vadd.f32 %v1824, %v1825
      %v1827 = vmul.f32 %v1826, %v623
      %v1828 = vadd.f32 %v1827, 1e-05
      %v1829 = vrsqrt.pop %v1828
      %v1830 = vmul.f32 %v1758, %v1829
      %v1831 = vmul.f32 %v1759, %v1829
      %v1832 = vmul.f32 %v1760, %v1829
      %v1833 = vmul.f32 %v1761, %v1829
      %v1834 = vmul.f32 %v1762, %v1829
      %v1835 = vmul.f32 %v1763, %v1829
      %v1836 = vmul.f32 %v1764, %v1829
      %v1837 = vmul.f32 %v1765, %v1829
      %v1838 = vmul.f32 %v1766, %v1829
      %v1839 = vmul.f32 %v1767, %v1829
      %v1840 = vmul.f32 %v1768, %v1829
      %v1841 = vmul.f32 %v1769, %v1829
      %v1842 = vmul.f32 %v1770, %v1829
      %v1843 = vmul.f32 %v1771, %v1829
      %v1844 = vmul.f32 %v1772, %v1829
      %v1845 = vmul.f32 %v1773, %v1829
      %s1846 = scalar_lea.vmem %s2, 1
      %v1847 = vld [vmem:[%s1846] sm:$0x1]
      %v1849 = vlaneseq
      %v1850 = vshrl.u32 %v1849, 7
      %v1851 = vsub.s32 0, %v1850
      %v1852 = vrot.slane %v1847, %v1851
      %v1854 = vmul.f32 %v1704, %v1852
      %v1855 = vmul.f32 %v1705, %v1852
      %v1856 = vmul.f32 %v1706, %v1852
      %v1857 = vmul.f32 %v1707, %v1852
      %v1858 = vmul.f32 %v1708, %v1852
      %v1859 = vmul.f32 %v1709, %v1852
      %v1860 = vmul.f32 %v1710, %v1852
      %v1861 = vmul.f32 %v1711, %v1852
      %v1862 = vmul.f32 %v1712, %v1852
      %v1863 = vmul.f32 %v1713, %v1852
      %v1864 = vmul.f32 %v1714, %v1852
      %v1865 = vmul.f32 %v1715, %v1852
      %v1866 = vmul.f32 %v1716, %v1852
      %v1867 = vmul.f32 %v1717, %v1852
      %v1868 = vmul.f32 %v1718, %v1852
      %v1869 = vmul.f32 %v1719, %v1852
      %v1870 = vmul.f32 %v1830, %v1852
      %v1871 = vmul.f32 %v1831, %v1852
      %v1872 = vmul.f32 %v1832, %v1852
      %v1873 = vmul.f32 %v1833, %v1852
      %v1874 = vmul.f32 %v1834, %v1852
      %v1875 = vmul.f32 %v1835, %v1852
      %v1876 = vmul.f32 %v1836, %v1852
      %v1877 = vmul.f32 %v1837, %v1852
      %v1878 = vmul.f32 %v1838, %v1852
      %v1879 = vmul.f32 %v1839, %v1852
      %v1880 = vmul.f32 %v1840, %v1852
      %v1881 = vmul.f32 %v1841, %v1852
      %v1882 = vmul.f32 %v1842, %v1852
      %v1883 = vmul.f32 %v1843, %v1852
      %v1884 = vmul.f32 %v1844, %v1852
      %v1885 = vmul.f32 %v1845, %v1852
      %s1886 = scalar_lea.vmem %s3, 1
      %v1887 = vld [vmem:[%s1886] sm:$0x1]
      %v1889 = vlaneseq
      %v1890 = vshrl.u32 %v1889, 7
      %v1891 = vsub.s32 0, %v1890
      %v1892 = vrot.slane %v1887, %v1891
      %v1894 = vadd.f32 %v1854, %v1892
      %v1895 = vadd.f32 %v1855, %v1892
      %v1896 = vadd.f32 %v1856, %v1892
      %v1897 = vadd.f32 %v1857, %v1892
      %v1898 = vadd.f32 %v1858, %v1892
      %v1899 = vadd.f32 %v1859, %v1892
      %v1900 = vadd.f32 %v1860, %v1892
      %v1901 = vadd.f32 %v1861, %v1892
      %v1902 = vadd.f32 %v1862, %v1892
      %v1903 = vadd.f32 %v1863, %v1892
      %v1904 = vadd.f32 %v1864, %v1892
      %v1905 = vadd.f32 %v1865, %v1892
      %v1906 = vadd.f32 %v1866, %v1892
      %v1907 = vadd.f32 %v1867, %v1892
      %v1908 = vadd.f32 %v1868, %v1892
      %v1909 = vadd.f32 %v1869, %v1892
      %v1910 = vadd.f32 %v1870, %v1892
      %v1911 = vadd.f32 %v1871, %v1892
      %v1912 = vadd.f32 %v1872, %v1892
      %v1913 = vadd.f32 %v1873, %v1892
      %v1914 = vadd.f32 %v1874, %v1892
      %v1915 = vadd.f32 %v1875, %v1892
      %v1916 = vadd.f32 %v1876, %v1892
      %v1917 = vadd.f32 %v1877, %v1892
      %v1918 = vadd.f32 %v1878, %v1892
      %v1919 = vadd.f32 %v1879, %v1892
      %v1920 = vadd.f32 %v1880, %v1892
      %v1921 = vadd.f32 %v1881, %v1892
      %v1922 = vadd.f32 %v1882, %v1892
      %v1923 = vadd.f32 %v1883, %v1892
      %v1924 = vadd.f32 %v1884, %v1892
      %v1925 = vadd.f32 %v1885, %v1892
      %v1926 = vxor.u32 %v1894, 2147483648
      %v1927 = vxor.u32 %v1895, 2147483648
      %v1928 = vxor.u32 %v1896, 2147483648
      %v1929 = vxor.u32 %v1897, 2147483648
      %v1930 = vxor.u32 %v1898, 2147483648
      %v1931 = vxor.u32 %v1899, 2147483648
      %v1932 = vxor.u32 %v1900, 2147483648
      %v1933 = vxor.u32 %v1901, 2147483648
      %v1934 = vxor.u32 %v1902, 2147483648
      %v1935 = vxor.u32 %v1903, 2147483648
      %v1936 = vxor.u32 %v1904, 2147483648
      %v1937 = vxor.u32 %v1905, 2147483648
      %v1938 = vxor.u32 %v1906, 2147483648
      %v1939 = vxor.u32 %v1907, 2147483648
      %v1940 = vxor.u32 %v1908, 2147483648
      %v1941 = vxor.u32 %v1909, 2147483648
      %v1942 = vxor.u32 %v1910, 2147483648
      %v1943 = vxor.u32 %v1911, 2147483648
      %v1944 = vxor.u32 %v1912, 2147483648
      %v1945 = vxor.u32 %v1913, 2147483648
      %v1946 = vxor.u32 %v1914, 2147483648
      %v1947 = vxor.u32 %v1915, 2147483648
      %v1948 = vxor.u32 %v1916, 2147483648
      %v1949 = vxor.u32 %v1917, 2147483648
      %v1950 = vxor.u32 %v1918, 2147483648
      %v1951 = vxor.u32 %v1919, 2147483648
      %v1952 = vxor.u32 %v1920, 2147483648
      %v1953 = vxor.u32 %v1921, 2147483648
      %v1954 = vxor.u32 %v1922, 2147483648
      %v1955 = vxor.u32 %v1923, 2147483648
      %v1956 = vxor.u32 %v1924, 2147483648
      %v1957 = vxor.u32 %v1925, 2147483648
      %v1958 = vmul.f32 %v1926, 1.442695
      %v1959 = vpow.pop %v1958
      %v1960 = vmul.f32 %v1927, 1.442695
      %v1961 = vpow.pop %v1960
      %v1962 = vmul.f32 %v1928, 1.442695
      %v1963 = vpow.pop %v1962
      %v1964 = vmul.f32 %v1929, 1.442695
      %v1965 = vpow.pop %v1964
      %v1966 = vmul.f32 %v1930, 1.442695
      %v1967 = vpow.pop %v1966
      %v1968 = vmul.f32 %v1931, 1.442695
      %v1969 = vpow.pop %v1968
      %v1970 = vmul.f32 %v1932, 1.442695
      %v1971 = vpow.pop %v1970
      %v1972 = vmul.f32 %v1933, 1.442695
      %v1973 = vpow.pop %v1972
      %v1974 = vmul.f32 %v1934, 1.442695
      %v1975 = vpow.pop %v1974
      %v1976 = vmul.f32 %v1935, 1.442695
      %v1977 = vpow.pop %v1976
      %v1978 = vmul.f32 %v1936, 1.442695
      %v1979 = vpow.pop %v1978
      %v1980 = vmul.f32 %v1937, 1.442695
      %v1981 = vpow.pop %v1980
      %v1982 = vmul.f32 %v1938, 1.442695
      %v1983 = vpow.pop %v1982
      %v1984 = vmul.f32 %v1939, 1.442695
      %v1985 = vpow.pop %v1984
      %v1986 = vmul.f32 %v1940, 1.442695
      %v1987 = vpow.pop %v1986
      %v1988 = vmul.f32 %v1941, 1.442695
      %v1989 = vpow.pop %v1988
      %v1990 = vmul.f32 %v1942, 1.442695
      %v1991 = vpow.pop %v1990
      %v1992 = vmul.f32 %v1943, 1.442695
      %v1993 = vpow.pop %v1992
      %v1994 = vmul.f32 %v1944, 1.442695
      %v1995 = vpow.pop %v1994
      %v1996 = vmul.f32 %v1945, 1.442695
      %v1997 = vpow.pop %v1996
      %v1998 = vmul.f32 %v1946, 1.442695
      %v1999 = vpow.pop %v1998
      %v2000 = vmul.f32 %v1947, 1.442695
      %v2001 = vpow.pop %v2000
      %v2002 = vmul.f32 %v1948, 1.442695
      %v2003 = vpow.pop %v2002
      %v2004 = vmul.f32 %v1949, 1.442695
      %v2005 = vpow.pop %v2004
      %v2006 = vmul.f32 %v1950, 1.442695
      %v2007 = vpow.pop %v2006
      %v2008 = vmul.f32 %v1951, 1.442695
      %v2009 = vpow.pop %v2008
      %v2010 = vmul.f32 %v1952, 1.442695
      %v2011 = vpow.pop %v2010
      %v2012 = vmul.f32 %v1953, 1.442695
      %v2013 = vpow.pop %v2012
      %v2014 = vmul.f32 %v1954, 1.442695
      %v2015 = vpow.pop %v2014
      %v2016 = vmul.f32 %v1955, 1.442695
      %v2017 = vpow.pop %v2016
      %v2018 = vmul.f32 %v1956, 1.442695
      %v2019 = vpow.pop %v2018
      %v2020 = vmul.f32 %v1957, 1.442695
      %v2021 = vpow.pop %v2020
      %v2022 = vadd.f32 %v1959, 1.0
      %v2023 = vadd.f32 %v1961, 1.0
      %v2024 = vadd.f32 %v1963, 1.0
      %v2025 = vadd.f32 %v1965, 1.0
      %v2026 = vadd.f32 %v1967, 1.0
      %v2027 = vadd.f32 %v1969, 1.0
      %v2028 = vadd.f32 %v1971, 1.0
      %v2029 = vadd.f32 %v1973, 1.0
      %v2030 = vadd.f32 %v1975, 1.0
      %v2031 = vadd.f32 %v1977, 1.0
      %v2032 = vadd.f32 %v1979, 1.0
      %v2033 = vadd.f32 %v1981, 1.0
      %v2034 = vadd.f32 %v1983, 1.0
      %v2035 = vadd.f32 %v1985, 1.0
      %v2036 = vadd.f32 %v1987, 1.0
      %v2037 = vadd.f32 %v1989, 1.0
      %v2038 = vadd.f32 %v1991, 1.0
      %v2039 = vadd.f32 %v1993, 1.0
      %v2040 = vadd.f32 %v1995, 1.0
      %v2041 = vadd.f32 %v1997, 1.0
      %v2042 = vadd.f32 %v1999, 1.0
      %v2043 = vadd.f32 %v2001, 1.0
      %v2044 = vadd.f32 %v2003, 1.0
      %v2045 = vadd.f32 %v2005, 1.0
      %v2046 = vadd.f32 %v2007, 1.0
      %v2047 = vadd.f32 %v2009, 1.0
      %v2048 = vadd.f32 %v2011, 1.0
      %v2049 = vadd.f32 %v2013, 1.0
      %v2050 = vadd.f32 %v2015, 1.0
      %v2051 = vadd.f32 %v2017, 1.0
      %v2052 = vadd.f32 %v2019, 1.0
      %v2053 = vadd.f32 %v2021, 1.0
      %v2054 = vrcp.pop %v2022
      %v2055 = vmul.f32 1.0, %v2054
      %v2056 = vrcp.pop %v2023
      %v2057 = vmul.f32 1.0, %v2056
      %v2058 = vrcp.pop %v2024
      %v2059 = vmul.f32 1.0, %v2058
      %v2060 = vrcp.pop %v2025
      %v2061 = vmul.f32 1.0, %v2060
      %v2062 = vrcp.pop %v2026
      %v2063 = vmul.f32 1.0, %v2062
      %v2064 = vrcp.pop %v2027
      %v2065 = vmul.f32 1.0, %v2064
      %v2066 = vrcp.pop %v2028
      %v2067 = vmul.f32 1.0, %v2066
      %v2068 = vrcp.pop %v2029
      %v2069 = vmul.f32 1.0, %v2068
      %v2070 = vrcp.pop %v2030
      %v2071 = vmul.f32 1.0, %v2070
      %v2072 = vrcp.pop %v2031
      %v2073 = vmul.f32 1.0, %v2072
      %v2074 = vrcp.pop %v2032
      %v2075 = vmul.f32 1.0, %v2074
      %v2076 = vrcp.pop %v2033
      %v2077 = vmul.f32 1.0, %v2076
      %v2078 = vrcp.pop %v2034
      %v2079 = vmul.f32 1.0, %v2078
      %v2080 = vrcp.pop %v2035
      %v2081 = vmul.f32 1.0, %v2080
      %v2082 = vrcp.pop %v2036
      %v2083 = vmul.f32 1.0, %v2082
      %v2084 = vrcp.pop %v2037
      %v2085 = vmul.f32 1.0, %v2084
      %v2086 = vrcp.pop %v2038
      %v2087 = vmul.f32 1.0, %v2086
      %v2088 = vrcp.pop %v2039
      %v2089 = vmul.f32 1.0, %v2088
      %v2090 = vrcp.pop %v2040
      %v2091 = vmul.f32 1.0, %v2090
      %v2092 = vrcp.pop %v2041
      %v2093 = vmul.f32 1.0, %v2092
      %v2094 = vrcp.pop %v2042
      %v2095 = vmul.f32 1.0, %v2094
      %v2096 = vrcp.pop %v2043
      %v2097 = vmul.f32 1.0, %v2096
      %v2098 = vrcp.pop %v2044
      %v2099 = vmul.f32 1.0, %v2098
      %v2100 = vrcp.pop %v2045
      %v2101 = vmul.f32 1.0, %v2100
      %v2102 = vrcp.pop %v2046
      %v2103 = vmul.f32 1.0, %v2102
      %v2104 = vrcp.pop %v2047
      %v2105 = vmul.f32 1.0, %v2104
      %v2106 = vrcp.pop %v2048
      %v2107 = vmul.f32 1.0, %v2106
      %v2108 = vrcp.pop %v2049
      %v2109 = vmul.f32 1.0, %v2108
      %v2110 = vrcp.pop %v2050
      %v2111 = vmul.f32 1.0, %v2110
      %v2112 = vrcp.pop %v2051
      %v2113 = vmul.f32 1.0, %v2112
      %v2114 = vrcp.pop %v2052
      %v2115 = vmul.f32 1.0, %v2114
      %v2116 = vrcp.pop %v2053
      %v2117 = vmul.f32 1.0, %v2116
      %2150 = vrot.lane.b32.xlu0 %v2055, 104
      %v2151 = vpop.permute.xlu0 %2150
      %2152 = vrot.lane.b32.xlu0 %v2057, 104
      %v2153 = vpop.permute.xlu0 %2152
      %2154 = vrot.lane.b32.xlu0 %v2059, 104
      %v2155 = vpop.permute.xlu0 %2154
      %2156 = vrot.lane.b32.xlu0 %v2061, 104
      %v2157 = vpop.permute.xlu0 %2156
      %2158 = vrot.lane.b32.xlu0 %v2063, 104
      %v2159 = vpop.permute.xlu0 %2158
      %2160 = vrot.lane.b32.xlu0 %v2065, 104
      %v2161 = vpop.permute.xlu0 %2160
      %2162 = vrot.lane.b32.xlu0 %v2067, 104
      %v2163 = vpop.permute.xlu0 %2162
      %2164 = vrot.lane.b32.xlu0 %v2069, 104
      %v2165 = vpop.permute.xlu0 %2164
      %2166 = vrot.lane.b32.xlu0 %v2071, 104
      %v2167 = vpop.permute.xlu0 %2166
      %2168 = vrot.lane.b32.xlu0 %v2073, 104
      %v2169 = vpop.permute.xlu0 %2168
      %2170 = vrot.lane.b32.xlu0 %v2075, 104
      %v2171 = vpop.permute.xlu0 %2170
      %2172 = vrot.lane.b32.xlu0 %v2077, 104
      %v2173 = vpop.permute.xlu0 %2172
      %2174 = vrot.lane.b32.xlu0 %v2079, 104
      %v2175 = vpop.permute.xlu0 %2174
      %2176 = vrot.lane.b32.xlu0 %v2081, 104
      %v2177 = vpop.permute.xlu0 %2176
      %2178 = vrot.lane.b32.xlu0 %v2083, 104
      %v2179 = vpop.permute.xlu0 %2178
      %2180 = vrot.lane.b32.xlu0 %v2085, 104
      %v2181 = vpop.permute.xlu0 %2180
      %2182 = vrot.lane.b32.xlu0 %v2087, 104
      %v2183 = vpop.permute.xlu0 %2182
      %2184 = vrot.lane.b32.xlu0 %v2089, 104
      %v2185 = vpop.permute.xlu0 %2184
      %2186 = vrot.lane.b32.xlu0 %v2091, 104
      %v2187 = vpop.permute.xlu0 %2186
      %2188 = vrot.lane.b32.xlu0 %v2093, 104
      %v2189 = vpop.permute.xlu0 %2188
      %2190 = vrot.lane.b32.xlu0 %v2095, 104
      %v2191 = vpop.permute.xlu0 %2190
      %2192 = vrot.lane.b32.xlu0 %v2097, 104
      %v2193 = vpop.permute.xlu0 %2192
      %2194 = vrot.lane.b32.xlu0 %v2099, 104
      %v2195 = vpop.permute.xlu0 %2194
      %2196 = vrot.lane.b32.xlu0 %v2101, 104
      %v2197 = vpop.permute.xlu0 %2196
      %2198 = vrot.lane.b32.xlu0 %v2103, 104
      %v2199 = vpop.permute.xlu0 %2198
      %2200 = vrot.lane.b32.xlu0 %v2105, 104
      %v2201 = vpop.permute.xlu0 %2200
      %2202 = vrot.lane.b32.xlu0 %v2107, 104
      %v2203 = vpop.permute.xlu0 %2202
      %2204 = vrot.lane.b32.xlu0 %v2109, 104
      %v2205 = vpop.permute.xlu0 %2204
      %2206 = vrot.lane.b32.xlu0 %v2111, 104
      %v2207 = vpop.permute.xlu0 %2206
      %2208 = vrot.lane.b32.xlu0 %v2113, 104
      %v2209 = vpop.permute.xlu0 %2208
      %2210 = vrot.lane.b32.xlu0 %v2115, 104
      %v2211 = vpop.permute.xlu0 %2210
      %2212 = vrot.lane.b32.xlu0 %v2117, 104
      %v2213 = vpop.permute.xlu0 %2212
      %v2246 = vmul.f32 %v1894, %v2151
      %v2247 = vmul.f32 %v1895, %v2153
      %v2248 = vmul.f32 %v1896, %v2155
      %v2249 = vmul.f32 %v1897, %v2157
      %v2250 = vmul.f32 %v1898, %v2159
      %v2251 = vmul.f32 %v1899, %v2161
      %v2252 = vmul.f32 %v1900, %v2163
      %v2253 = vmul.f32 %v1901, %v2165
      %v2254 = vmul.f32 %v1902, %v2167
      %v2255 = vmul.f32 %v1903, %v2169
      %v2256 = vmul.f32 %v1904, %v2171
      %v2257 = vmul.f32 %v1905, %v2173
      %v2258 = vmul.f32 %v1906, %v2175
      %v2259 = vmul.f32 %v1907, %v2177
      %v2260 = vmul.f32 %v1908, %v2179
      %v2261 = vmul.f32 %v1909, %v2181
      %v2262 = vmul.f32 %v1910, %v2183
      %v2263 = vmul.f32 %v1911, %v2185
      %v2264 = vmul.f32 %v1912, %v2187
      %v2265 = vmul.f32 %v1913, %v2189
      %v2266 = vmul.f32 %v1914, %v2191
      %v2267 = vmul.f32 %v1915, %v2193
      %v2268 = vmul.f32 %v1916, %v2195
      %v2269 = vmul.f32 %v1917, %v2197
      %v2270 = vmul.f32 %v1918, %v2199
      %v2271 = vmul.f32 %v1919, %v2201
      %v2272 = vmul.f32 %v1920, %v2203
      %v2273 = vmul.f32 %v1921, %v2205
      %v2274 = vmul.f32 %v1922, %v2207
      %v2275 = vmul.f32 %v1923, %v2209
      %v2276 = vmul.f32 %v1924, %v2211
      %v2277 = vmul.f32 %v1925, %v2213
      %v2278 = vadd.f32 %v1237, %v2246
      %v2279 = vadd.f32 %v1238, %v2247
      %v2280 = vadd.f32 %v1239, %v2248
      %v2281 = vadd.f32 %v1240, %v2249
      %v2282 = vadd.f32 %v1241, %v2250
      %v2283 = vadd.f32 %v1242, %v2251
      %v2284 = vadd.f32 %v1243, %v2252
      %v2285 = vadd.f32 %v1244, %v2253
      %v2286 = vadd.f32 %v1245, %v2254
      %v2287 = vadd.f32 %v1246, %v2255
      %v2288 = vadd.f32 %v1247, %v2256
      %v2289 = vadd.f32 %v1248, %v2257
      %v2290 = vadd.f32 %v1249, %v2258
      %v2291 = vadd.f32 %v1250, %v2259
      %v2292 = vadd.f32 %v1251, %v2260
      %v2293 = vadd.f32 %v1252, %v2261
      %v2294 = vadd.f32 %v1253, %v2262
      %v2295 = vadd.f32 %v1254, %v2263
      %v2296 = vadd.f32 %v1255, %v2264
      %v2297 = vadd.f32 %v1256, %v2265
      %v2298 = vadd.f32 %v1257, %v2266
      %v2299 = vadd.f32 %v1258, %v2267
      %v2300 = vadd.f32 %v1259, %v2268
      %v2301 = vadd.f32 %v1260, %v2269
      %v2302 = vadd.f32 %v1261, %v2270
      %v2303 = vadd.f32 %v1262, %v2271
      %v2304 = vadd.f32 %v1263, %v2272
      %v2305 = vadd.f32 %v1264, %v2273
      %v2306 = vadd.f32 %v1265, %v2274
      %v2307 = vadd.f32 %v1266, %v2275
      %v2308 = vadd.f32 %v1267, %v2276
      %v2309 = vadd.f32 %v1268, %v2277
      %v2310 = vmul.f32 %v2278, 0.70710677
      %v2311 = vmul.f32 %v2279, 0.70710677
      %v2312 = vmul.f32 %v2280, 0.70710677
      %v2313 = vmul.f32 %v2281, 0.70710677
      %v2314 = vmul.f32 %v2282, 0.70710677
      %v2315 = vmul.f32 %v2283, 0.70710677
      %v2316 = vmul.f32 %v2284, 0.70710677
      %v2317 = vmul.f32 %v2285, 0.70710677
      %v2318 = vmul.f32 %v2286, 0.70710677
      %v2319 = vmul.f32 %v2287, 0.70710677
      %v2320 = vmul.f32 %v2288, 0.70710677
      %v2321 = vmul.f32 %v2289, 0.70710677
      %v2322 = vmul.f32 %v2290, 0.70710677
      %v2323 = vmul.f32 %v2291, 0.70710677
      %v2324 = vmul.f32 %v2292, 0.70710677
      %v2325 = vmul.f32 %v2293, 0.70710677
      %v2326 = vmul.f32 %v2294, 0.70710677
      %v2327 = vmul.f32 %v2295, 0.70710677
      %v2328 = vmul.f32 %v2296, 0.70710677
      %v2329 = vmul.f32 %v2297, 0.70710677
      %v2330 = vmul.f32 %v2298, 0.70710677
      %v2331 = vmul.f32 %v2299, 0.70710677
      %v2332 = vmul.f32 %v2300, 0.70710677
      %v2333 = vmul.f32 %v2301, 0.70710677
      %v2334 = vmul.f32 %v2302, 0.70710677
      %v2335 = vmul.f32 %v2303, 0.70710677
      %v2336 = vmul.f32 %v2304, 0.70710677
      %v2337 = vmul.f32 %v2305, 0.70710677
      %v2338 = vmul.f32 %v2306, 0.70710677
      %v2339 = vmul.f32 %v2307, 0.70710677
      %v2340 = vmul.f32 %v2308, 0.70710677
      %v2341 = vmul.f32 %v2309, 0.70710677
      %v2342 = vld [vmem:[%s4] sm:$0xff]
      %v2343 = vld [vmem:[%s4 + $0x8] sm:$0xff]
      %v2344 = vld [vmem:[%s4 + $0x10] sm:$0xff]
      %v2346 = vsel %vm263, %v2310, 0
      %v2349 = vsel %vm263, %v2311, 0
      %v2352 = vsel %vm263, %v2312, 0
      %v2355 = vsel %vm263, %v2313, 0
      %v2358 = vsel %vm263, %v2314, 0
      %v2361 = vsel %vm263, %v2315, 0
      %v2364 = vsel %vm263, %v2316, 0
      %v2367 = vsel %vm263, %v2317, 0
      %v2370 = vsel %vm263, %v2318, 0
      %v2373 = vsel %vm263, %v2319, 0
      %v2376 = vsel %vm263, %v2320, 0
      %v2379 = vsel %vm263, %v2321, 0
      %v2382 = vsel %vm263, %v2322, 0
      %v2385 = vsel %vm263, %v2323, 0
      %v2388 = vsel %vm263, %v2324, 0
      %v2391 = vsel %vm263, %v2325, 0
      %v2394 = vsel %vm263, %v2326, 0
      %v2397 = vsel %vm263, %v2327, 0
      %v2400 = vsel %vm263, %v2328, 0
      %v2403 = vsel %vm263, %v2329, 0
      %v2406 = vsel %vm263, %v2330, 0
      %v2409 = vsel %vm263, %v2331, 0
      %v2412 = vsel %vm263, %v2332, 0
      %v2415 = vsel %vm263, %v2333, 0
      %v2418 = vsel %vm263, %v2334, 0
      %v2421 = vsel %vm263, %v2335, 0
      %v2424 = vsel %vm263, %v2336, 0
      %v2427 = vsel %vm263, %v2337, 0
      %v2430 = vsel %vm263, %v2338, 0
      %v2433 = vsel %vm263, %v2339, 0
      %v2436 = vsel %vm263, %v2340, 0
      %v2439 = vsel %vm263, %v2341, 0
      %2441 = vmatprep.subr.mxu0 0.0
      %2442 = vmatpush1.msra.mxu0 %v2342
      %2443 = vmatprep.subr.mxu0 0.0
      %2444 = vmatpush1.msra.mxu0 %v2343
      %2445 = vmatprep.subr.mxu0 0.0
      %2446 = vmatpush1.msra.mxu0 %v2344
      %2447 = vmatprep.subr.mxu0 0.0
      %2448 = vmatpush1.msra.mxu0 0.0
      %2449 = vmatprep.subr.mxu0 0.0
      %2450 = vmatpush1.msra.mxu0 0.0
      %2451 = vmatprep.subr.mxu0 0.0
      %2452 = vmatpush1.msra.mxu0 0.0
      %2453 = vmatprep.subr.mxu0 0.0
      %2454 = vmatpush1.msra.mxu0 0.0
      %2455 = vmatprep.subr.mxu0 0.0
      %2456 = vmatpush1.msra.mxu0 0.0
      %2457 = vmatprep.subr.mxu0 0.0
      %2458 = vmatpush1.msra.mxu0 0.0
      %2459 = vmatprep.subr.mxu0 0.0
      %2460 = vmatpush1.msra.mxu0 0.0
      %2461 = vmatprep.subr.mxu0 0.0
      %2462 = vmatpush1.msra.mxu0 0.0
      %2463 = vmatprep.subr.mxu0 0.0
      %2464 = vmatpush1.msra.mxu0 0.0
      %2465 = vmatprep.subr.mxu0 0.0
      %2466 = vmatpush1.msra.mxu0 0.0
      %2467 = vmatprep.subr.mxu0 0.0
      %2468 = vmatpush1.msra.mxu0 0.0
      %2469 = vmatprep.subr.mxu0 0.0
      %2470 = vmatpush1.msra.mxu0 0.0
      %2471 = vmatprep.subr.mxu0 0.0
      %2472 = vmatpush1.msra.mxu0 0.0
      %2473 = vmatprep.subr.mxu0 0.0
      %2474 = vmatpush1.msra.mxu0 0.0
      %2475 = vmatprep.subr.mxu0 0.0
      %2476 = vmatpush1.msra.mxu0 0.0
      %2477 = vmatprep.subr.mxu0 0.0
      %2478 = vmatpush1.msra.mxu0 0.0
      %2479 = vmatprep.subr.mxu0 0.0
      %2480 = vmatpush1.msra.mxu0 0.0
      %2481 = vmatprep.subr.mxu0 0.0
      %2482 = vmatpush1.msra.mxu0 0.0
      %2483 = vmatprep.subr.mxu0 0.0
      %2484 = vmatpush1.msra.mxu0 0.0
      %2485 = vmatprep.subr.mxu0 0.0
      %2486 = vmatpush1.msra.mxu0 0.0
      %2487 = vmatprep.subr.mxu0 0.0
      %2488 = vmatpush1.msra.mxu0 0.0
      %2489 = vmatprep.subr.mxu0 0.0
      %2490 = vmatpush1.msra.mxu0 0.0
      %2491 = vmatprep.subr.mxu0 0.0
      %2492 = vmatpush1.msra.mxu0 0.0
      %2493 = vmatprep.subr.mxu0 0.0
      %2494 = vmatpush1.msra.mxu0 0.0
      %2495 = vmatprep.subr.mxu0 0.0
      %2496 = vmatpush1.msra.mxu0 0.0
      %2497 = vmatprep.subr.mxu0 0.0
      %2498 = vmatpush1.msra.mxu0 0.0
      %2499 = vmatprep.subr.mxu0 0.0
      %2500 = vmatpush1.msra.mxu0 0.0
      %2501 = vmatprep.subr.mxu0 0.0
      %2502 = vmatpush1.msra.mxu0 0.0
      %2503 = vmatprep.subr.mxu0 0.0
      %2504 = vmatpush1.msra.mxu0 0.0
      %2505 = vmatprep.mubr.f32.mxu0 0.0
      %2506 = vmatmul.mubr.f32.gmra.mrb[0].mxu0 %v2346
      %v2507 = vpop.f32.mrb[0].mxu0
      %v2508 = vadd.f32 0.0, %v2507
      %v2509 = vpop.f32.mrb[0].mxu0
      %2510 = vmatprep.mubr.f32.mxu0 0.0
      %2511 = vmatmul.mubr.f32.gmra.mrb[0].mxu0 %v2349
      %v2512 = vpop.f32.mrb[0].mxu0
      %v2513 = vadd.f32 0.0, %v2512
      %v2514 = vpop.f32.mrb[0].mxu0
      %2515 = vmatprep.mubr.f32.mxu0 0.0
      %2516 = vmatmul.mubr.f32.gmra.mrb[0].mxu0 %v2352
      %v2517 = vpop.f32.mrb[0].mxu0
      %v2518 = vadd.f32 0.0, %v2517
      %v2519 = vpop.f32.mrb[0].mxu0
      %2520 = vmatprep.mubr.f32.mxu0 0.0
      %2521 = vmatmul.mubr.f32.gmra.mrb[0].mxu0 %v2355
      %v2522 = vpop.f32.mrb[0].mxu0
      %v2523 = vadd.f32 0.0, %v2522
      %v2524 = vpop.f32.mrb[0].mxu0
      %2525 = vmatprep.mubr.f32.mxu0 0.0
      %2526 = vmatmul.mubr.f32.gmra.mrb[0].mxu0 %v2358
      %v2527 = vpop.f32.mrb[0].mxu0
      %v2528 = vadd.f32 0.0, %v2527
      %v2529 = vpop.f32.mrb[0].mxu0
      %2530 = vmatprep.mubr.f32.mxu0 0.0
      %2531 = vmatmul.mubr.f32.gmra.mrb[0].mxu0 %v2361
      %v2532 = vpop.f32.mrb[0].mxu0
      %v2533 = vadd.f32 0.0, %v2532
      %v2534 = vpop.f32.mrb[0].mxu0
      %2535 = vmatprep.mubr.f32.mxu0 0.0
      %2536 = vmatmul.mubr.f32.gmra.mrb[0].mxu0 %v2364
      %v2537 = vpop.f32.mrb[0].mxu0
      %v2538 = vadd.f32 0.0, %v2537
      %v2539 = vpop.f32.mrb[0].mxu0
      %2540 = vmatprep.mubr.f32.mxu0 0.0
      %2541 = vmatmul.mubr.f32.gmra.mrb[0].mxu0 %v2367
      %v2542 = vpop.f32.mrb[0].mxu0
      %v2543 = vadd.f32 0.0, %v2542
      %v2544 = vpop.f32.mrb[0].mxu0
      %2545 = vmatprep.mubr.f32.mxu0 0.0
      %2546 = vmatmul.mubr.f32.gmra.mrb[0].mxu0 %v2370
      %v2547 = vpop.f32.mrb[0].mxu0
      %v2548 = vadd.f32 0.0, %v2547
      %v2549 = vpop.f32.mrb[0].mxu0
      %2550 = vmatprep.mubr.f32.mxu0 0.0
      %2551 = vmatmul.mubr.f32.gmra.mrb[0].mxu0 %v2373
      %v2552 = vpop.f32.mrb[0].mxu0
      %v2553 = vadd.f32 0.0, %v2552
      %v2554 = vpop.f32.mrb[0].mxu0
      %2555 = vmatprep.mubr.f32.mxu0 0.0
      %2556 = vmatmul.mubr.f32.gmra.mrb[0].mxu0 %v2376
      %v2557 = vpop.f32.mrb[0].mxu0
      %v2558 = vadd.f32 0.0, %v2557
      %v2559 = vpop.f32.mrb[0].mxu0
      %2560 = vmatprep.mubr.f32.mxu0 0.0
      %2561 = vmatmul.mubr.f32.gmra.mrb[0].mxu0 %v2379
      %v2562 = vpop.f32.mrb[0].mxu0
      %v2563 = vadd.f32 0.0, %v2562
      %v2564 = vpop.f32.mrb[0].mxu0
      %2565 = vmatprep.mubr.f32.mxu0 0.0
      %2566 = vmatmul.mubr.f32.gmra.mrb[0].mxu0 %v2382
      %v2567 = vpop.f32.mrb[0].mxu0
      %v2568 = vadd.f32 0.0, %v2567
      %v2569 = vpop.f32.mrb[0].mxu0
      %2570 = vmatprep.mubr.f32.mxu0 0.0
      %2571 = vmatmul.mubr.f32.gmra.mrb[0].mxu0 %v2385
      %v2572 = vpop.f32.mrb[0].mxu0
      %v2573 = vadd.f32 0.0, %v2572
      %v2574 = vpop.f32.mrb[0].mxu0
      %2575 = vmatprep.mubr.f32.mxu0 0.0
      %2576 = vmatmul.mubr.f32.gmra.mrb[0].mxu0 %v2388
      %v2577 = vpop.f32.mrb[0].mxu0
      %v2578 = vadd.f32 0.0, %v2577
      %v2579 = vpop.f32.mrb[0].mxu0
      %2580 = vmatprep.mubr.f32.mxu0 0.0
      %2581 = vmatmul.mubr.f32.gmra.mrb[0].mxu0 %v2391
      %v2582 = vpop.f32.mrb[0].mxu0
      %v2583 = vadd.f32 0.0, %v2582
      %v2584 = vpop.f32.mrb[0].mxu0
      %2585 = vmatprep.mubr.f32.mxu0 0.0
      %2586 = vmatmul.mubr.f32.gmra.mrb[0].mxu0 %v2394
      %v2587 = vpop.f32.mrb[0].mxu0
      %v2588 = vadd.f32 0.0, %v2587
      %v2589 = vpop.f32.mrb[0].mxu0
      %2590 = vmatprep.mubr.f32.mxu0 0.0
      %2591 = vmatmul.mubr.f32.gmra.mrb[0].mxu0 %v2397
      %v2592 = vpop.f32.mrb[0].mxu0
      %v2593 = vadd.f32 0.0, %v2592
      %v2594 = vpop.f32.mrb[0].mxu0
      %2595 = vmatprep.mubr.f32.mxu0 0.0
      %2596 = vmatmul.mubr.f32.gmra.mrb[0].mxu0 %v2400
      %v2597 = vpop.f32.mrb[0].mxu0
      %v2598 = vadd.f32 0.0, %v2597
      %v2599 = vpop.f32.mrb[0].mxu0
      %2600 = vmatprep.mubr.f32.mxu0 0.0
      %2601 = vmatmul.mubr.f32.gmra.mrb[0].mxu0 %v2403
      %v2602 = vpop.f32.mrb[0].mxu0
      %v2603 = vadd.f32 0.0, %v2602
      %v2604 = vpop.f32.mrb[0].mxu0
      %2605 = vmatprep.mubr.f32.mxu0 0.0
      %2606 = vmatmul.mubr.f32.gmra.mrb[0].mxu0 %v2406
      %v2607 = vpop.f32.mrb[0].mxu0
      %v2608 = vadd.f32 0.0, %v2607
      %v2609 = vpop.f32.mrb[0].mxu0
      %2610 = vmatprep.mubr.f32.mxu0 0.0
      %2611 = vmatmul.mubr.f32.gmra.mrb[0].mxu0 %v2409
      %v2612 = vpop.f32.mrb[0].mxu0
      %v2613 = vadd.f32 0.0, %v2612
      %v2614 = vpop.f32.mrb[0].mxu0
      %2615 = vmatprep.mubr.f32.mxu0 0.0
      %2616 = vmatmul.mubr.f32.gmra.mrb[0].mxu0 %v2412
      %v2617 = vpop.f32.mrb[0].mxu0
      %v2618 = vadd.f32 0.0, %v2617
      %v2619 = vpop.f32.mrb[0].mxu0
      %2620 = vmatprep.mubr.f32.mxu0 0.0
      %2621 = vmatmul.mubr.f32.gmra.mrb[0].mxu0 %v2415
      %v2622 = vpop.f32.mrb[0].mxu0
      %v2623 = vadd.f32 0.0, %v2622
      %v2624 = vpop.f32.mrb[0].mxu0
      %2625 = vmatprep.mubr.f32.mxu0 0.0
      %2626 = vmatmul.mubr.f32.gmra.mrb[0].mxu0 %v2418
      %v2627 = vpop.f32.mrb[0].mxu0
      %v2628 = vadd.f32 0.0, %v2627
      %v2629 = vpop.f32.mrb[0].mxu0
      %2630 = vmatprep.mubr.f32.mxu0 0.0
      %2631 = vmatmul.mubr.f32.gmra.mrb[0].mxu0 %v2421
      %v2632 = vpop.f32.mrb[0].mxu0
      %v2633 = vadd.f32 0.0, %v2632
      %v2634 = vpop.f32.mrb[0].mxu0
      %2635 = vmatprep.mubr.f32.mxu0 0.0
      %2636 = vmatmul.mubr.f32.gmra.mrb[0].mxu0 %v2424
      %v2637 = vpop.f32.mrb[0].mxu0
      %v2638 = vadd.f32 0.0, %v2637
      %v2639 = vpop.f32.mrb[0].mxu0
      %2640 = vmatprep.mubr.f32.mxu0 0.0
      %2641 = vmatmul.mubr.f32.gmra.mrb[0].mxu0 %v2427
      %v2642 = vpop.f32.mrb[0].mxu0
      %v2643 = vadd.f32 0.0, %v2642
      %v2644 = vpop.f32.mrb[0].mxu0
      %2645 = vmatprep.mubr.f32.mxu0 0.0
      %2646 = vmatmul.mubr.f32.gmra.mrb[0].mxu0 %v2430
      %v2647 = vpop.f32.mrb[0].mxu0
      %v2648 = vadd.f32 0.0, %v2647
      %v2649 = vpop.f32.mrb[0].mxu0
      %2650 = vmatprep.mubr.f32.mxu0 0.0
      %2651 = vmatmul.mubr.f32.gmra.mrb[0].mxu0 %v2433
      %v2652 = vpop.f32.mrb[0].mxu0
      %v2653 = vadd.f32 0.0, %v2652
      %v2654 = vpop.f32.mrb[0].mxu0
      %2655 = vmatprep.mubr.f32.mxu0 0.0
      %2656 = vmatmul.mubr.f32.gmra.mrb[0].mxu0 %v2436
      %v2657 = vpop.f32.mrb[0].mxu0
      %v2658 = vadd.f32 0.0, %v2657
      %v2659 = vpop.f32.mrb[0].mxu0
      %2660 = vmatprep.mubr.f32.mxu0 0.0
      %2661 = vmatmul.mubr.f32.gmra.mrb[0].mxu0 %v2439
      %v2662 = vpop.f32.mrb[0].mxu0
      %v2663 = vadd.f32 0.0, %v2662
      %v2664 = vpop.f32.mrb[0].mxu0
      %2665 = vdwg.mxu0
      %2666 = vst [vmem:[%s226] sm:$0xff] %v2508
      %2667 = vst [vmem:[%s226 + $0x8] sm:$0xff] %v2513
      %2668 = vst [vmem:[%s226 + $0x10] sm:$0xff] %v2518
      %2669 = vst [vmem:[%s226 + $0x18] sm:$0xff] %v2523
      %2670 = vst [vmem:[%s226 + $0x20] sm:$0xff] %v2528
      %2671 = vst [vmem:[%s226 + $0x28] sm:$0xff] %v2533
      %2672 = vst [vmem:[%s226 + $0x30] sm:$0xff] %v2538
      %2673 = vst [vmem:[%s226 + $0x38] sm:$0xff] %v2543
      %2674 = vst [vmem:[%s226 + $0x40] sm:$0xff] %v2548
      %2675 = vst [vmem:[%s226 + $0x48] sm:$0xff] %v2553
      %2676 = vst [vmem:[%s226 + $0x50] sm:$0xff] %v2558
      %2677 = vst [vmem:[%s226 + $0x58] sm:$0xff] %v2563
      %2678 = vst [vmem:[%s226 + $0x60] sm:$0xff] %v2568
      %2679 = vst [vmem:[%s226 + $0x68] sm:$0xff] %v2573
      %2680 = vst [vmem:[%s226 + $0x70] sm:$0xff] %v2578
      %2681 = vst [vmem:[%s226 + $0x78] sm:$0xff] %v2583
      %2682 = vst [vmem:[%s226 + $0x80] sm:$0xff] %v2588
      %2683 = vst [vmem:[%s226 + $0x88] sm:$0xff] %v2593
      %2684 = vst [vmem:[%s226 + $0x90] sm:$0xff] %v2598
      %2685 = vst [vmem:[%s226 + $0x98] sm:$0xff] %v2603
      %2686 = vst [vmem:[%s226 + $0xa0] sm:$0xff] %v2608
      %2687 = vst [vmem:[%s226 + $0xa8] sm:$0xff] %v2613
      %2688 = vst [vmem:[%s226 + $0xb0] sm:$0xff] %v2618
      %2689 = vst [vmem:[%s226 + $0xb8] sm:$0xff] %v2623
      %2690 = vst [vmem:[%s226 + $0xc0] sm:$0xff] %v2628
      %2691 = vst [vmem:[%s226 + $0xc8] sm:$0xff] %v2633
      %2692 = vst [vmem:[%s226 + $0xd0] sm:$0xff] %v2638
      %2693 = vst [vmem:[%s226 + $0xd8] sm:$0xff] %v2643
      %2694 = vst [vmem:[%s226 + $0xe0] sm:$0xff] %v2648
      %2695 = vst [vmem:[%s226 + $0xe8] sm:$0xff] %v2653
      %2696 = vst [vmem:[%s226 + $0xf0] sm:$0xff] %v2658
      %2697 = vst [vmem:[%s226 + $0xf8] sm:$0xff] %v2663
      %s2698 = smul.u32 32, %s16
      %p2699 = scmp.lt.s32.totalorder %s2698, 127
      %s2700 = scalar_select %p2699, %s2698, 127
      %s2701 = smul.addr %s2700, 8
      %s2702 = scalar_lea.vmem %s5, %s2701
      // Predicated region
      $region41: #{forward.1} parent=39 // pred_check
        %p2703 = pneg %p144
      $region42: #{forward.1} parent=39 // pred_check_branch
        %2705 = sbr.rel (%p2703) target = $region44
      $region43: #{forward.1} parent=39 // pred_region
        %s2706 = smul.u32 32, %s16
      $region44: #{forward.1} parent=39 // pred_fallthru
        _
    $region40: #{forward.1} parent=5 // pred_fallthru
      _
    %p2707 = scmp.le.s32.totalorder 2, %s11
    // Predicated region
    $region45: #{forward.1} parent=5 // pred_check
      %p2708 = pneg %p2707
    $region46: #{forward.1} parent=5 // pred_check_branch
      %2710 = sbr.rel (%p2708) target = $region48
    $region47: #{forward.1} parent=5 // pred_region
      %s2711 = ssub.s32 %s11, 2
      // Predicated region
      $region49: #{forward.1} parent=47 // pred_check
        %p2712 = pneg %p150
      $region50: #{forward.1} parent=47 // pred_check_branch
        %2714 = sbr.rel (%p2712) target = $region52
      $region51: #{forward.1} parent=47 // pred_region
        %s2715 = smul.u32 32, %s17
        %p2716 = scmp.lt.s32.totalorder %s2715, 127
        %s2717 = scalar_select %p2716, %s2715, 127
        %s2718 = smul.addr %s2717, 8
        %s2719 = scalar_lea.vmem %s5, %s2718
      $region52: #{forward.1} parent=47 // pred_fallthru
        _
    $region48: #{forward.1} parent=5 // pred_fallthru
      _
  $region6: #{forward.1} parent=0 // loop_footer
    %s15 = sadd.s32 1, %s11
  $region7: #{forward.1} parent=0 // loop_footer_branch
    %10 = sbr.rel target = $region3
  $region8: #{forward.1} parent=0 // loop_exit
    _

</llo_original>
